<compile_context>
chip_gen: v6e
topology: v6e:2x2x1
jax: 0.10.0
libtpu: 0.0.40
codegen_flags: <defaults>
</compile_context>

<pallas_src>
import functools

import jax
import jax.numpy as jnp
from jax.experimental import pallas as pl
from jax.experimental.pallas import tpu as pltpu

LATENT = 8
DIMS = [LATENT, 32, 128, 256, 512, 28 * 28]
OUT_DIM = 28 * 28          # 784
DEFAULT_TILE_B = 512       # multiple of 128; ~7 MiB VMEM footprint (v5e-safe)


def _round_up(n, m):
    return ((n + m - 1) // m) * m


# ----------------------------- Pallas kernel ---------------------------------
def decoder_kernel(x_ref,
                   w1_ref, b1_ref,
                   w2_ref, b2_ref,
                   w3_ref, b3_ref,
                   w4_ref, b4_ref,
                   w5_ref, b5_ref,
                   o_ref):
    """Fused 5-layer MLP with ReLU. bf16 matmul inputs, f32 accumulation."""

    def layer(h_bf16, w_ref, b_ref):
        acc = jnp.dot(h_bf16, w_ref[...], preferred_element_type=jnp.float32)
        # bias is a (1, out) f32 row; jnp broadcasting handles the batch dim.
        return jnp.maximum(acc + b_ref[...], 0.0)

    h = x_ref[...].astype(jnp.bfloat16)
    h = layer(h, w1_ref, b1_ref).astype(jnp.bfloat16)
    h = layer(h, w2_ref, b2_ref).astype(jnp.bfloat16)
    h = layer(h, w3_ref, b3_ref).astype(jnp.bfloat16)
    h = layer(h, w4_ref, b4_ref).astype(jnp.bfloat16)
    o_ref[...] = layer(h, w5_ref, b5_ref).astype(o_ref.dtype)   # (tb, 784)


# ------------------------------ wrapper ---------------------------------------
def prepare_params(params_f32):
    """Cast weights to bf16, keep biases f32. No output padding needed."""
    return [(W.astype(jnp.bfloat16), b.astype(jnp.float32)) for W, b in params_f32]


@functools.partial(jax.jit, static_argnames=("tile_b", "out_dtype"))
def decoder_forward(x, prepared_params, tile_b=DEFAULT_TILE_B, out_dtype=jnp.float32):
    """x: (B, latent) float32. prepared_params: output of prepare_params()."""
    B, latent = x.shape

    # Adaptive batch tiling:
    #  * >= 2 grid steps once B >= 256 so the "parallel" axis shards across both
    #    TensorCores on v7x (no-op elsewhere).
    #  * tb = round_up(cdiv(B, n_tiles), 8) minimizes padded rows for odd B.
    if B >= 256:
        n_tiles = max(2, pl.cdiv(B, tile_b))
    else:
        n_tiles = pl.cdiv(B, tile_b)            # == 1 for small batches
    tb = _round_up(pl.cdiv(B, n_tiles), 8)
    B_pad = n_tiles * tb
    if B_pad != B:
        x = jnp.zeros((B_pad, latent), x.dtype).at[:B, :].set(x)

    flat_args = [x]
    in_specs = [pl.BlockSpec((tb, latent), lambda i: (i, 0))]
    for W, b in prepared_params:
        flat_args += [W, b]
        # Constant index_map -> weights/biases stay VMEM-resident across steps.
        in_specs += [pl.BlockSpec(W.shape, lambda i: (0, 0)),
                     pl.BlockSpec(b.shape, lambda i: (0, 0))]

    y = pl.pallas_call(
        decoder_kernel,
        out_shape=jax.ShapeDtypeStruct((B_pad, OUT_DIM), out_dtype),
        grid=(n_tiles,),
        in_specs=in_specs,
        # (tb, 784): last dim equals the full array dim -> legal block shape;
        # 6 of 7 output vregs per row store unmasked, only the tail 16 lanes mask.
        out_specs=pl.BlockSpec((tb, OUT_DIM), lambda i: (i, 0)),
        compiler_params=pltpu.CompilerParams(
            dimension_semantics=("parallel",)),
    )(*flat_args)

    # Drop batch padding; reshape is a free view (no feature pad to slice off).
    return y[:B].reshape(-1, 1, 28, 28)


# ----------------------- deterministic parameter init -------------------------
def init_params(latent, key):
    dims = [latent] + DIMS[1:]
    params = []
    for i in range(len(dims) - 1):
        fan_in, fan_out = dims[i], dims[i + 1]
        key, kw, kb = jax.random.split(key, 3)
        bound = 1.0 / jnp.sqrt(jnp.float32(fan_in))
        W = jax.random.uniform(kw, (fan_in, fan_out), jnp.float32, -bound, bound)
        b = jax.random.uniform(kb, (1, fan_out), jnp.float32, -bound, bound)
        params.append((W, b))
    return params


# ------------------------------ reference -------------------------------------
def decoder_reference(x, params_f32):
    """Mirrors the kernel arithmetic (bf16 matmul inputs, f32 accumulation)."""
    h = x.astype(jnp.bfloat16)
    out = None
    for W, b in params_f32:
        acc = jnp.dot(h, W.astype(jnp.bfloat16),
                      preferred_element_type=jnp.float32) + b
        out = jnp.maximum(acc, 0.0)
        h = out.astype(jnp.bfloat16)
    return out.reshape(-1, 1, 28, 28)


if __name__ == "__main__":
    latent = LATENT
    batch = 4

    key = jax.random.PRNGKey(0)
    key, kx = jax.random.split(key)
    x = jax.random.normal(kx, (batch, latent), jnp.float32)

    params = init_params(latent, key)
    prepared = prepare_params(params)

    out = decoder_forward(x, prepared)
    out = jax.block_until_ready(out)

    ref = decoder_reference(x, params)
    assert out.shape == (batch, 1, 28, 28), out.shape
    assert jnp.allclose(out, ref, atol=2e-2, rtol=2e-2), "mismatch vs reference"

    print("KERNEL_OK")
</pallas_src>

<mosaic_0001>
module attributes {stable_mosaic.version = 11 : i64} {
  func.func @decoder_kernel(%arg0: i32, %arg1: memref<8x8xf32, #tpu.memory_space<vmem>>, %arg2: memref<8x32xbf16, #tpu.memory_space<vmem>>, %arg3: memref<1x32xf32, #tpu.memory_space<vmem>>, %arg4: memref<32x128xbf16, #tpu.memory_space<vmem>>, %arg5: memref<1x128xf32, #tpu.memory_space<vmem>>, %arg6: memref<128x256xbf16, #tpu.memory_space<vmem>>, %arg7: memref<1x256xf32, #tpu.memory_space<vmem>>, %arg8: memref<256x512xbf16, #tpu.memory_space<vmem>>, %arg9: memref<1x512xf32, #tpu.memory_space<vmem>>, %arg10: memref<512x784xbf16, #tpu.memory_space<vmem>>, %arg11: memref<1x784xf32, #tpu.memory_space<vmem>>, %arg12: memref<8x784xf32, #tpu.memory_space<vmem>>) attributes {dimension_semantics = [#tpu.dimension_semantics<parallel>], iteration_bounds = array<i64: 1>, scalar_prefetch = 0 : i64, scratch_operands = 0 : i64, tpu.core_type = #tpu.core_type<tc>, window_params = [{transform_indices = @transform_0, window_bounds = array<i64: 8, 8>}, {pipeline_mode = #tpu.pipeline_mode<synchronous>, transform_indices = @transform_1, window_bounds = array<i64: 8, 32>}, {pipeline_mode = #tpu.pipeline_mode<synchronous>, transform_indices = @transform_2, window_bounds = array<i64: 1, 32>}, {pipeline_mode = #tpu.pipeline_mode<synchronous>, transform_indices = @transform_3, window_bounds = array<i64: 32, 128>}, {pipeline_mode = #tpu.pipeline_mode<synchronous>, transform_indices = @transform_4, window_bounds = array<i64: 1, 128>}, {pipeline_mode = #tpu.pipeline_mode<synchronous>, transform_indices = @transform_5, window_bounds = array<i64: 128, 256>}, {pipeline_mode = #tpu.pipeline_mode<synchronous>, transform_indices = @transform_6, window_bounds = array<i64: 1, 256>}, {pipeline_mode = #tpu.pipeline_mode<synchronous>, transform_indices = @transform_7, window_bounds = array<i64: 256, 512>}, {pipeline_mode = #tpu.pipeline_mode<synchronous>, transform_indices = @transform_8, window_bounds = array<i64: 1, 512>}, {pipeline_mode = #tpu.pipeline_mode<synchronous>, transform_indices = @transform_9, window_bounds = array<i64: 512, 784>}, {pipeline_mode = #tpu.pipeline_mode<synchronous>, transform_indices = @transform_10, window_bounds = array<i64: 1, 784>}, {transform_indices = @transform_11, window_bounds = array<i64: 8, 784>}]} {
    %c0 = arith.constant 0 : index
    %c0_0 = arith.constant 0 : index
    %0 = vector.load %arg1[%c0, %c0_0] : memref<8x8xf32, #tpu.memory_space<vmem>>, vector<8x8xf32>
    %1 = arith.truncf %0 : vector<8x8xf32> to vector<8x8xbf16>
    %c0_1 = arith.constant 0 : index
    %c0_2 = arith.constant 0 : index
    %2 = vector.load %arg2[%c0_1, %c0_2] : memref<8x32xbf16, #tpu.memory_space<vmem>>, vector<8x32xbf16>
    %cst = arith.constant dense<0.000000e+00> : vector<8x32xf32>
    %3 = tpu.matmul %1, %2, %cst {dimension_numbers = #tpu.dot_dimension_numbers<[1], [0], [0], [1], [0, 0, 1, 1], [], []>} : vector<8x8xbf16>, vector<8x32xbf16>, vector<8x32xf32> -> vector<8x32xf32>
    %c0_3 = arith.constant 0 : index
    %c0_4 = arith.constant 0 : index
    %4 = vector.load %arg3[%c0_3, %c0_4] : memref<1x32xf32, #tpu.memory_space<vmem>>, vector<1x32xf32>
    %5 = vector.broadcast %4 : vector<1x32xf32> to vector<8x32xf32>
    %6 = arith.addf %3, %5 : vector<8x32xf32>
    %cst_5 = arith.constant 0.000000e+00 : f32
    %7 = vector.broadcast %cst_5 : f32 to vector<8x32xf32>
    %8 = arith.maximumf %6, %7 : vector<8x32xf32>
    %9 = arith.truncf %8 : vector<8x32xf32> to vector<8x32xbf16>
    %c0_6 = arith.constant 0 : index
    %c0_7 = arith.constant 0 : index
    %10 = vector.load %arg4[%c0_6, %c0_7] : memref<32x128xbf16, #tpu.memory_space<vmem>>, vector<32x128xbf16>
    %cst_8 = arith.constant dense<0.000000e+00> : vector<8x128xf32>
    %11 = tpu.matmul %9, %10, %cst_8 {dimension_numbers = #tpu.dot_dimension_numbers<[1], [0], [0], [1], [0, 0, 1, 1], [], []>} : vector<8x32xbf16>, vector<32x128xbf16>, vector<8x128xf32> -> vector<8x128xf32>
    %c0_9 = arith.constant 0 : index
    %c0_10 = arith.constant 0 : index
    %12 = vector.load %arg5[%c0_9, %c0_10] : memref<1x128xf32, #tpu.memory_space<vmem>>, vector<1x128xf32>
    %13 = vector.broadcast %12 : vector<1x128xf32> to vector<8x128xf32>
    %14 = arith.addf %11, %13 : vector<8x128xf32>
    %cst_11 = arith.constant 0.000000e+00 : f32
    %15 = vector.broadcast %cst_11 : f32 to vector<8x128xf32>
    %16 = arith.maximumf %14, %15 : vector<8x128xf32>
    %17 = arith.truncf %16 : vector<8x128xf32> to vector<8x128xbf16>
    %c0_12 = arith.constant 0 : index
    %c0_13 = arith.constant 0 : index
    %18 = vector.load %arg6[%c0_12, %c0_13] : memref<128x256xbf16, #tpu.memory_space<vmem>>, vector<128x256xbf16>
    %cst_14 = arith.constant dense<0.000000e+00> : vector<8x256xf32>
    %19 = tpu.matmul %17, %18, %cst_14 {dimension_numbers = #tpu.dot_dimension_numbers<[1], [0], [0], [1], [0, 0, 1, 1], [], []>} : vector<8x128xbf16>, vector<128x256xbf16>, vector<8x256xf32> -> vector<8x256xf32>
    %c0_15 = arith.constant 0 : index
    %c0_16 = arith.constant 0 : index
    %20 = vector.load %arg7[%c0_15, %c0_16] : memref<1x256xf32, #tpu.memory_space<vmem>>, vector<1x256xf32>
    %21 = vector.broadcast %20 : vector<1x256xf32> to vector<8x256xf32>
    %22 = arith.addf %19, %21 : vector<8x256xf32>
    %cst_17 = arith.constant 0.000000e+00 : f32
    %23 = vector.broadcast %cst_17 : f32 to vector<8x256xf32>
    %24 = arith.maximumf %22, %23 : vector<8x256xf32>
    %25 = arith.truncf %24 : vector<8x256xf32> to vector<8x256xbf16>
    %c0_18 = arith.constant 0 : index
    %c0_19 = arith.constant 0 : index
    %26 = vector.load %arg8[%c0_18, %c0_19] : memref<256x512xbf16, #tpu.memory_space<vmem>>, vector<256x512xbf16>
    %cst_20 = arith.constant dense<0.000000e+00> : vector<8x512xf32>
    %27 = tpu.matmul %25, %26, %cst_20 {dimension_numbers = #tpu.dot_dimension_numbers<[1], [0], [0], [1], [0, 0, 1, 1], [], []>} : vector<8x256xbf16>, vector<256x512xbf16>, vector<8x512xf32> -> vector<8x512xf32>
    %c0_21 = arith.constant 0 : index
    %c0_22 = arith.constant 0 : index
    %28 = vector.load %arg9[%c0_21, %c0_22] : memref<1x512xf32, #tpu.memory_space<vmem>>, vector<1x512xf32>
    %29 = vector.broadcast %28 : vector<1x512xf32> to vector<8x512xf32>
    %30 = arith.addf %27, %29 : vector<8x512xf32>
    %cst_23 = arith.constant 0.000000e+00 : f32
    %31 = vector.broadcast %cst_23 : f32 to vector<8x512xf32>
    %32 = arith.maximumf %30, %31 : vector<8x512xf32>
    %33 = arith.truncf %32 : vector<8x512xf32> to vector<8x512xbf16>
    %c0_24 = arith.constant 0 : index
    %c0_25 = arith.constant 0 : index
    %34 = vector.load %arg10[%c0_24, %c0_25] : memref<512x784xbf16, #tpu.memory_space<vmem>>, vector<512x784xbf16>
    %cst_26 = arith.constant dense<0.000000e+00> : vector<8x784xf32>
    %35 = tpu.matmul %33, %34, %cst_26 {dimension_numbers = #tpu.dot_dimension_numbers<[1], [0], [0], [1], [0, 0, 1, 1], [], []>} : vector<8x512xbf16>, vector<512x784xbf16>, vector<8x784xf32> -> vector<8x784xf32>
    %c0_27 = arith.constant 0 : index
    %c0_28 = arith.constant 0 : index
    %36 = vector.load %arg11[%c0_27, %c0_28] : memref<1x784xf32, #tpu.memory_space<vmem>>, vector<1x784xf32>
    %37 = vector.broadcast %36 : vector<1x784xf32> to vector<8x784xf32>
    %38 = arith.addf %35, %37 : vector<8x784xf32>
    %cst_29 = arith.constant 0.000000e+00 : f32
    %39 = vector.broadcast %cst_29 : f32 to vector<8x784xf32>
    %40 = arith.maximumf %38, %39 : vector<8x784xf32>
    %c0_30 = arith.constant 0 : index
    %c0_31 = arith.constant 0 : index
    %41 = vector.load %arg12[%c0_30, %c0_31] : memref<8x784xf32, #tpu.memory_space<vmem>>, vector<8x784xf32>
    tpu.vector_store %arg12[%c0_30, %c0_31], %40 {strides = array<i32>} : memref<8x784xf32, #tpu.memory_space<vmem>>, vector<8x784xf32>,
    return
  }
  func.func @transform_0(%arg0: i32) -> (i32, i32) {
    %c0_i32 = arith.constant 0 : i32
    %c0_i32_0 = arith.constant 0 : i32
    return %arg0, %c0_i32 : i32, i32
  }
  func.func @transform_1(%arg0: i32) -> (i32, i32) {
    %c0_i32 = arith.constant 0 : i32
    %c0_i32_0 = arith.constant 0 : i32
    %c0_i32_1 = arith.constant 0 : i32
    return %c0_i32, %c0_i32_0 : i32, i32
  }
  func.func @transform_2(%arg0: i32) -> (i32, i32) {
    %c0_i32 = arith.constant 0 : i32
    %c0_i32_0 = arith.constant 0 : i32
    %c0_i32_1 = arith.constant 0 : i32
    return %c0_i32, %c0_i32_0 : i32, i32
  }
  func.func @transform_3(%arg0: i32) -> (i32, i32) {
    %c0_i32 = arith.constant 0 : i32
    %c0_i32_0 = arith.constant 0 : i32
    %c0_i32_1 = arith.constant 0 : i32
    return %c0_i32, %c0_i32_0 : i32, i32
  }
  func.func @transform_4(%arg0: i32) -> (i32, i32) {
    %c0_i32 = arith.constant 0 : i32
    %c0_i32_0 = arith.constant 0 : i32
    %c0_i32_1 = arith.constant 0 : i32
    return %c0_i32, %c0_i32_0 : i32, i32
  }
  func.func @transform_5(%arg0: i32) -> (i32, i32) {
    %c0_i32 = arith.constant 0 : i32
    %c0_i32_0 = arith.constant 0 : i32
    %c0_i32_1 = arith.constant 0 : i32
    return %c0_i32, %c0_i32_0 : i32, i32
  }
  func.func @transform_6(%arg0: i32) -> (i32, i32) {
    %c0_i32 = arith.constant 0 : i32
    %c0_i32_0 = arith.constant 0 : i32
    %c0_i32_1 = arith.constant 0 : i32
    return %c0_i32, %c0_i32_0 : i32, i32
  }
  func.func @transform_7(%arg0: i32) -> (i32, i32) {
    %c0_i32 = arith.constant 0 : i32
    %c0_i32_0 = arith.constant 0 : i32
    %c0_i32_1 = arith.constant 0 : i32
    return %c0_i32, %c0_i32_0 : i32, i32
  }
  func.func @transform_8(%arg0: i32) -> (i32, i32) {
    %c0_i32 = arith.constant 0 : i32
    %c0_i32_0 = arith.constant 0 : i32
    %c0_i32_1 = arith.constant 0 : i32
    return %c0_i32, %c0_i32_0 : i32, i32
  }
  func.func @transform_9(%arg0: i32) -> (i32, i32) {
    %c0_i32 = arith.constant 0 : i32
    %c0_i32_0 = arith.constant 0 : i32
    %c0_i32_1 = arith.constant 0 : i32
    return %c0_i32, %c0_i32_0 : i32, i32
  }
  func.func @transform_10(%arg0: i32) -> (i32, i32) {
    %c0_i32 = arith.constant 0 : i32
    %c0_i32_0 = arith.constant 0 : i32
    %c0_i32_1 = arith.constant 0 : i32
    return %c0_i32, %c0_i32_0 : i32, i32
  }
  func.func @transform_11(%arg0: i32) -> (i32, i32) {
    %c0_i32 = arith.constant 0 : i32
    %c0_i32_0 = arith.constant 0 : i32
    return %arg0, %c0_i32 : i32, i32
  }
}

</mosaic_0001>

<llo_original>
// kernel: decoder_forward.1
$region0: #{decoder_forward.1}
  #allocation0 [shape = 'u32[]', space=smem, size = 0x4, offset = 0x4, fixed_abs, tag = 'smem constant byte address 0x4 - core index']
  #allocation1 [shape = 'u32[144,128]{1,0:T(1,128)}', space=vmem, size = 0x12000, scoped, tag = 'internal scratch']
  %s0 = inlined_call_operand.vmem [shape: f32[8,8], index: 0, kind: input, shape index: {}]
  %s1 = inlined_call_operand.vmem [shape: bf16[8,32], index: 1, kind: input, shape index: {}]
  %s2 = inlined_call_operand.vmem [shape: f32[1,32], index: 2, kind: input, shape index: {}]
  %s3 = inlined_call_operand.vmem [shape: bf16[32,128], index: 3, kind: input, shape index: {}]
  %s4 = inlined_call_operand.vmem [shape: f32[1,128], index: 4, kind: input, shape index: {}]
  %s5 = inlined_call_operand.vmem [shape: bf16[128,256], index: 5, kind: input, shape index: {}]
  %s6 = inlined_call_operand.vmem [shape: f32[1,256], index: 6, kind: input, shape index: {}]
  %s7 = inlined_call_operand.vmem [shape: bf16[256,512], index: 7, kind: input, shape index: {}]
  %s8 = inlined_call_operand.vmem [shape: f32[1,512], index: 8, kind: input, shape index: {}]
  %s9 = inlined_call_operand.vmem [shape: bf16[512,784], index: 9, kind: input, shape index: {}]
  %s10 = inlined_call_operand.vmem [shape: f32[1,784], index: 10, kind: input, shape index: {}]
  %s11 = inlined_call_operand.vmem [shape: f32[8,784], index: 11, kind: output, shape index: {}]
  %s12 = sld [smem:[#allocation0]]
  $region54: #{decoder_forward.1} parent=0
    _
  %s14 = ssub.s32 1, %s12
  %s15 = scalar_select 0, %s14, %s12
  // Predicated region
  $region2: #{decoder_forward.1} parent=0 // pred_check
    _
  $region3: #{decoder_forward.1} parent=0 // pred_check_branch
    %17 = sbr.rel (0) target = $region5
  $region4: #{decoder_forward.1} parent=0 // pred_region
    _
  $region5: #{decoder_forward.1} parent=0 // pred_fallthru
    _
  // Predicated region
  $region6: #{decoder_forward.1} parent=0 // pred_check
    _
  $region7: #{decoder_forward.1} parent=0 // pred_check_branch
    %19 = sbr.rel (0) target = $region9
  $region8: #{decoder_forward.1} parent=0 // pred_region
    _
  $region9: #{decoder_forward.1} parent=0 // pred_fallthru
    _
  // Predicated region
  $region10: #{decoder_forward.1} parent=0 // pred_check
    _
  $region11: #{decoder_forward.1} parent=0 // pred_check_branch
    %21 = sbr.rel (0) target = $region13
  $region12: #{decoder_forward.1} parent=0 // pred_region
    _
  $region13: #{decoder_forward.1} parent=0 // pred_fallthru
    _
  // Predicated region
  $region14: #{decoder_forward.1} parent=0 // pred_check
    _
  $region15: #{decoder_forward.1} parent=0 // pred_check_branch
    %23 = sbr.rel (0) target = $region17
  $region16: #{decoder_forward.1} parent=0 // pred_region
    _
  $region17: #{decoder_forward.1} parent=0 // pred_fallthru
    _
  // Predicated region
  $region18: #{decoder_forward.1} parent=0 // pred_check
    _
  $region19: #{decoder_forward.1} parent=0 // pred_check_branch
    %25 = sbr.rel (0) target = $region21
  $region20: #{decoder_forward.1} parent=0 // pred_region
    _
  $region21: #{decoder_forward.1} parent=0 // pred_fallthru
    _
  // Predicated region
  $region22: #{decoder_forward.1} parent=0 // pred_check
    _
  $region23: #{decoder_forward.1} parent=0 // pred_check_branch
    %27 = sbr.rel (0) target = $region25
  $region24: #{decoder_forward.1} parent=0 // pred_region
    _
  $region25: #{decoder_forward.1} parent=0 // pred_fallthru
    _
  // Predicated region
  $region26: #{decoder_forward.1} parent=0 // pred_check
    _
  $region27: #{decoder_forward.1} parent=0 // pred_check_branch
    %29 = sbr.rel (0) target = $region29
  $region28: #{decoder_forward.1} parent=0 // pred_region
    _
  $region29: #{decoder_forward.1} parent=0 // pred_fallthru
    _
  // Predicated region
  $region30: #{decoder_forward.1} parent=0 // pred_check
    _
  $region31: #{decoder_forward.1} parent=0 // pred_check_branch
    %31 = sbr.rel (0) target = $region33
  $region32: #{decoder_forward.1} parent=0 // pred_region
    _
  $region33: #{decoder_forward.1} parent=0 // pred_fallthru
    _
  // Predicated region
  $region34: #{decoder_forward.1} parent=0 // pred_check
    _
  $region35: #{decoder_forward.1} parent=0 // pred_check_branch
    %33 = sbr.rel (0) target = $region37
  $region36: #{decoder_forward.1} parent=0 // pred_region
    _
  $region37: #{decoder_forward.1} parent=0 // pred_fallthru
    _
  // Predicated region
  $region38: #{decoder_forward.1} parent=0 // pred_check
    _
  $region39: #{decoder_forward.1} parent=0 // pred_check_branch
    %35 = sbr.rel (0) target = $region41
  $region40: #{decoder_forward.1} parent=0 // pred_region
    _
  $region41: #{decoder_forward.1} parent=0 // pred_fallthru
    _
  // Predicated region
  $region42: #{decoder_forward.1} parent=0 // pred_check
    _
  $region43: #{decoder_forward.1} parent=0 // pred_check_branch
    %37 = sbr.rel (0) target = $region45
  $region44: #{decoder_forward.1} parent=0 // pred_region
    _
  $region45: #{decoder_forward.1} parent=0 // pred_fallthru
    _
  %v39 = vld [vmem:[%s0] sm:$0xff]
  %v40 = vpack.c.bf16 %v39, %v39
  %v41 = vld [vmem:[%s1] sm:$0xf]
  %v42 = vld [vmem:[%s2] sm:$0x1]
  %v44 = vlaneseq
  %v45 = vshrl.u32 %v44, 7
  %v46 = vsub.s32 0, %v45
  %v47 = vrot.slane %v42, %v46
  %vm49 = vcmask 64512
  %v51 = vsel %vm49, %v40, 0
  %vm53 = vcmask 1043456
  %v55 = vsel %vm53, %v41, 0
  %57 = vmatprep.subr.bf16.mxu0 0
  %58 = vmatpush1.bf16.msra.mxu0 0
  %59 = vmatprep.subr.bf16.mxu0 0
  %60 = vmatpush1.bf16.msra.mxu0 0
  %61 = vmatprep.subr.bf16.mxu0 0
  %62 = vmatpush1.bf16.msra.mxu0 0
  %63 = vmatprep.subr.bf16.mxu0 0
  %64 = vmatpush1.bf16.msra.mxu0 0
  %65 = vmatprep.subr.bf16.mxu0 0
  %66 = vmatpush1.bf16.msra.mxu0 0
  %67 = vmatprep.subr.bf16.mxu0 0
  %68 = vmatpush1.bf16.msra.mxu0 0
  %69 = vmatprep.subr.bf16.mxu0 0
  %70 = vmatpush1.bf16.msra.mxu0 0
  %71 = vmatprep.subr.bf16.mxu0 0
  %72 = vmatpush1.bf16.msra.mxu0 %v55
  %73 = vmatprep.subr.bf16.mxu0 0
  %74 = vmatpush2.bf16.msra.mxu0 0
  %75 = vmatprep.subr.bf16.mxu0 0
  %76 = vmatpush2.bf16.msra.mxu0 0
  %77 = vmatprep.subr.bf16.mxu0 0
  %78 = vmatpush2.bf16.msra.mxu0 0
  %79 = vmatprep.subr.bf16.mxu0 0
  %80 = vmatpush2.bf16.msra.mxu0 0
  %81 = vmatprep.subr.bf16.mxu0 0
  %82 = vmatpush2.bf16.msra.mxu0 0
  %83 = vmatprep.subr.bf16.mxu0 0
  %84 = vmatpush2.bf16.msra.mxu0 0
  %85 = vmatprep.subr.bf16.mxu0 0
  %86 = vmatpush2.bf16.msra.mxu0 0
  %87 = vmatprep.subr.bf16.mxu0 0
  %88 = vmatpush2.bf16.msra.mxu0 0
  %89 = vmatprep.mubr.bf16.mxu0 0
  %90 = vmatmul.mubr.bf16.gmra.mxu0 %v51
  %v91 = vpop.f32.mrf.mxu0
  %v92 = vadd.f32 %v47, %v91
  %v93 = vpop.f32.mrf.mxu0
  %v94 = vpop.f32.mrf.mxu0
  %v95 = vpop.f32.mrf.mxu0
  %96 = vdwg.mxu0
  %v97 = vmax.f32 %v92, 0.0
  %v98 = vpack.c.bf16 %v97, %v97
  %v99 = vld [vmem:[%s3] sm:$0xf]
  %v100 = vld [vmem:[%s3 + $0x4] sm:$0xf]
  %v101 = vld [vmem:[%s3 + $0x8] sm:$0xf]
  %v102 = vld [vmem:[%s3 + $0xc] sm:$0xf]
  %v103 = vld [vmem:[%s4] sm:$0x1]
  %v105 = vlaneseq
  %v106 = vshrl.u32 %v105, 7
  %v107 = vsub.s32 0, %v106
  %v108 = vrot.slane %v103, %v107
  %v114 = vunpack.c.l.b16 %v99
  %v115 = vunpack.c.l.b16 %v100
  %v116 = vunpack.c.l.b16 %v101
  %v117 = vunpack.c.l.b16 %v102
  %v118 = vpack.c.b16 %v115, %v114
  %v119 = vpack.c.b16 %v117, %v116
  %vm122 = vcmask 261120
  %v124 = vsel %vm122, %v98, 0
  %126 = vmatprep.subr.bf16.mxu0 0
  %127 = vmatpush1.bf16.msra.mxu0 0
  %128 = vmatprep.subr.bf16.mxu0 0
  %129 = vmatpush1.bf16.msra.mxu0 0
  %130 = vmatprep.subr.bf16.mxu0 0
  %131 = vmatpush1.bf16.msra.mxu0 0
  %132 = vmatprep.subr.bf16.mxu0 0
  %133 = vmatpush1.bf16.msra.mxu0 0
  %134 = vmatprep.subr.bf16.mxu0 0
  %135 = vmatpush1.bf16.msra.mxu0 0
  %136 = vmatprep.subr.bf16.mxu0 0
  %137 = vmatpush1.bf16.msra.mxu0 0
  %138 = vmatprep.subr.bf16.mxu0 0
  %139 = vmatpush1.bf16.msra.mxu0 %v119
  %140 = vmatprep.subr.bf16.mxu0 0
  %141 = vmatpush1.bf16.msra.mxu0 %v118
  %142 = vmatprep.subr.bf16.mxu0 0
  %143 = vmatpush2.bf16.msra.mxu0 0
  %144 = vmatprep.subr.bf16.mxu0 0
  %145 = vmatpush2.bf16.msra.mxu0 0
  %146 = vmatprep.subr.bf16.mxu0 0
  %147 = vmatpush2.bf16.msra.mxu0 0
  %148 = vmatprep.subr.bf16.mxu0 0
  %149 = vmatpush2.bf16.msra.mxu0 0
  %150 = vmatprep.subr.bf16.mxu0 0
  %151 = vmatpush2.bf16.msra.mxu0 0
  %152 = vmatprep.subr.bf16.mxu0 0
  %153 = vmatpush2.bf16.msra.mxu0 0
  %154 = vmatprep.subr.bf16.mxu0 0
  %155 = vmatpush2.bf16.msra.mxu0 0
  %156 = vmatprep.subr.bf16.mxu0 0
  %157 = vmatpush2.bf16.msra.mxu0 0
  %158 = vmatprep.mubr.bf16.mxu0 0
  %159 = vmatmul.mubr.bf16.gmra.mxu0 %v124
  %v160 = vpop.f32.mrf.mxu0
  %v161 = vadd.f32 %v108, %v160
  %v162 = vpop.f32.mrf.mxu0
  %v163 = vpop.f32.mrf.mxu0
  %v164 = vpop.f32.mrf.mxu0
  %165 = vdwg.mxu0
  %v166 = vmax.f32 %v161, 0.0
  %v167 = vpack.c.bf16 %v166, %v166
  %v168 = vld [vmem:[%s5] sm:$0xff]
  %v169 = vld [vmem:[%s5 + $0x8] sm:$0xff]
  %v170 = vld [vmem:[%s5 + $0x10] sm:$0xff]
  %v171 = vld [vmem:[%s5 + $0x18] sm:$0xff]
  %v172 = vld [vmem:[%s5 + $0x20] sm:$0xff]
  %v173 = vld [vmem:[%s5 + $0x28] sm:$0xff]
  %v174 = vld [vmem:[%s5 + $0x30] sm:$0xff]
  %v175 = vld [vmem:[%s5 + $0x38] sm:$0xff]
  %v176 = vld [vmem:[%s5 + $0x40] sm:$0xff]
  %v177 = vld [vmem:[%s5 + $0x48] sm:$0xff]
  %v178 = vld [vmem:[%s5 + $0x50] sm:$0xff]
  %v179 = vld [vmem:[%s5 + $0x58] sm:$0xff]
  %v180 = vld [vmem:[%s5 + $0x60] sm:$0xff]
  %v181 = vld [vmem:[%s5 + $0x68] sm:$0xff]
  %v182 = vld [vmem:[%s5 + $0x70] sm:$0xff]
  %v183 = vld [vmem:[%s5 + $0x78] sm:$0xff]
  %v184 = vld [vmem:[%s6] sm:$0x3]
  %v186 = vlaneseq
  %v187 = vshrl.u32 %v186, 7
  %v188 = vsub.s32 0, %v187
  %v189 = vrot.slane %v184, %v188
  %v190 = vlaneseq
  %v191 = vshrl.u32 %v190, 7
  %v192 = vsub.s32 1, %v191
  %v193 = vrot.slane %v184, %v192
  %v212 = vunpack.c.l.b16 %v168
  %v213 = vunpack.c.h.b16 %v168
  %v214 = vunpack.c.l.b16 %v169
  %v215 = vunpack.c.h.b16 %v169
  %v216 = vunpack.c.l.b16 %v170
  %v217 = vunpack.c.h.b16 %v170
  %v218 = vunpack.c.l.b16 %v171
  %v219 = vunpack.c.h.b16 %v171
  %v220 = vunpack.c.l.b16 %v172
  %v221 = vunpack.c.h.b16 %v172
  %v222 = vunpack.c.l.b16 %v173
  %v223 = vunpack.c.h.b16 %v173
  %v224 = vunpack.c.l.b16 %v174
  %v225 = vunpack.c.h.b16 %v174
  %v226 = vunpack.c.l.b16 %v175
  %v227 = vunpack.c.h.b16 %v175
  %v228 = vunpack.c.l.b16 %v176
  %v229 = vunpack.c.h.b16 %v176
  %v230 = vunpack.c.l.b16 %v177
  %v231 = vunpack.c.h.b16 %v177
  %v232 = vunpack.c.l.b16 %v178
  %v233 = vunpack.c.h.b16 %v178
  %v234 = vunpack.c.l.b16 %v179
  %v235 = vunpack.c.h.b16 %v179
  %v236 = vunpack.c.l.b16 %v180
  %v237 = vunpack.c.h.b16 %v180
  %v238 = vunpack.c.l.b16 %v181
  %v239 = vunpack.c.h.b16 %v181
  %v240 = vunpack.c.l.b16 %v182
  %v241 = vunpack.c.h.b16 %v182
  %v242 = vunpack.c.l.b16 %v183
  %v243 = vunpack.c.h.b16 %v183
  %v244 = vpack.c.b16 %v214, %v212
  %v245 = vpack.c.b16 %v215, %v213
  %v246 = vpack.c.b16 %v218, %v216
  %v247 = vpack.c.b16 %v219, %v217
  %v248 = vpack.c.b16 %v222, %v220
  %v249 = vpack.c.b16 %v223, %v221
  %v250 = vpack.c.b16 %v226, %v224
  %v251 = vpack.c.b16 %v227, %v225
  %v252 = vpack.c.b16 %v230, %v228
  %v253 = vpack.c.b16 %v231, %v229
  %v254 = vpack.c.b16 %v234, %v232
  %v255 = vpack.c.b16 %v235, %v233
  %v256 = vpack.c.b16 %v238, %v236
  %v257 = vpack.c.b16 %v239, %v237
  %v258 = vpack.c.b16 %v242, %v240
  %v259 = vpack.c.b16 %v243, %v241
  %276 = vmatprep.subr.bf16.mxu0 %v259
  %277 = vmatpush1.bf16.msra.mxu0 %v258
  %278 = vmatprep.subr.bf16.mxu0 %v257
  %279 = vmatpush1.bf16.msra.mxu0 %v256
  %280 = vmatprep.subr.bf16.mxu0 %v255
  %281 = vmatpush1.bf16.msra.mxu0 %v254
  %282 = vmatprep.subr.bf16.mxu0 %v253
  %283 = vmatpush1.bf16.msra.mxu0 %v252
  %284 = vmatprep.subr.bf16.mxu0 %v251
  %285 = vmatpush1.bf16.msra.mxu0 %v250
  %286 = vmatprep.subr.bf16.mxu0 %v249
  %287 = vmatpush1.bf16.msra.mxu0 %v248
  %288 = vmatprep.subr.bf16.mxu0 %v247
  %289 = vmatpush1.bf16.msra.mxu0 %v246
  %290 = vmatprep.subr.bf16.mxu0 %v245
  %291 = vmatpush1.bf16.msra.mxu0 %v244
  %292 = vmatprep.subr.bf16.mxu0 0
  %293 = vmatpush2.bf16.msra.mxu0 0
  %294 = vmatprep.subr.bf16.mxu0 0
  %295 = vmatpush2.bf16.msra.mxu0 0
  %296 = vmatprep.subr.bf16.mxu0 0
  %297 = vmatpush2.bf16.msra.mxu0 0
  %298 = vmatprep.subr.bf16.mxu0 0
  %299 = vmatpush2.bf16.msra.mxu0 0
  %300 = vmatprep.subr.bf16.mxu0 0
  %301 = vmatpush2.bf16.msra.mxu0 0
  %302 = vmatprep.subr.bf16.mxu0 0
  %303 = vmatpush2.bf16.msra.mxu0 0
  %304 = vmatprep.subr.bf16.mxu0 0
  %305 = vmatpush2.bf16.msra.mxu0 0
  %306 = vmatprep.subr.bf16.mxu0 0
  %307 = vmatpush2.bf16.msra.mxu0 0
  %308 = vmatprep.mubr.bf16.mxu0 0
  %309 = vmatmul.mubr.bf16.gmra.mxu0 %v167
  %v310 = vpop.f32.mrf.mxu0
  %v311 = vadd.f32 %v189, %v310
  %v312 = vpop.f32.mrf.mxu0
  %v313 = vadd.f32 %v193, %v312
  %v314 = vpop.f32.mrf.mxu0
  %v315 = vpop.f32.mrf.mxu0
  %316 = vdwg.mxu0
  %v317 = vmax.f32 %v311, 0.0
  %v318 = vmax.f32 %v313, 0.0
  %v319 = vpack.c.bf16 %v317, %v317
  %v320 = vpack.c.bf16 %v318, %v318
  %v321 = vld [vmem:[%s7] sm:$0xff]
  %v322 = vld [vmem:[%s7 + $0x8] sm:$0xff]
  %v323 = vld [vmem:[%s7 + $0x10] sm:$0xff]
  %v324 = vld [vmem:[%s7 + $0x18] sm:$0xff]
  %v325 = vld [vmem:[%s7 + $0x20] sm:$0xff]
  %v326 = vld [vmem:[%s7 + $0x28] sm:$0xff]
  %v327 = vld [vmem:[%s7 + $0x30] sm:$0xff]
  %v328 = vld [vmem:[%s7 + $0x38] sm:$0xff]
  %v329 = vld [vmem:[%s7 + $0x40] sm:$0xff]
  %v330 = vld [vmem:[%s7 + $0x48] sm:$0xff]
  %v331 = vld [vmem:[%s7 + $0x50] sm:$0xff]
  %v332 = vld [vmem:[%s7 + $0x58] sm:$0xff]
  %v333 = vld [vmem:[%s7 + $0x60] sm:$0xff]
  %v334 = vld [vmem:[%s7 + $0x68] sm:$0xff]
  %v335 = vld [vmem:[%s7 + $0x70] sm:$0xff]
  %v336 = vld [vmem:[%s7 + $0x78] sm:$0xff]
  %v337 = vld [vmem:[%s7 + $0x80] sm:$0xff]
  %v338 = vld [vmem:[%s7 + $0x88] sm:$0xff]
  %v339 = vld [vmem:[%s7 + $0x90] sm:$0xff]
  %v340 = vld [vmem:[%s7 + $0x98] sm:$0xff]
  %v341 = vld [vmem:[%s7 + $0xa0] sm:$0xff]
  %v342 = vld [vmem:[%s7 + $0xa8] sm:$0xff]
  %v343 = vld [vmem:[%s7 + $0xb0] sm:$0xff]
  %v344 = vld [vmem:[%s7 + $0xb8] sm:$0xff]
  %v345 = vld [vmem:[%s7 + $0xc0] sm:$0xff]
  %v346 = vld [vmem:[%s7 + $0xc8] sm:$0xff]
  %v347 = vld [vmem:[%s7 + $0xd0] sm:$0xff]
  %v348 = vld [vmem:[%s7 + $0xd8] sm:$0xff]
  %v349 = vld [vmem:[%s7 + $0xe0] sm:$0xff]
  %v350 = vld [vmem:[%s7 + $0xe8] sm:$0xff]
  %v351 = vld [vmem:[%s7 + $0xf0] sm:$0xff]
  %v352 = vld [vmem:[%s7 + $0xf8] sm:$0xff]
  %v353 = vld [vmem:[%s7 + $0x100] sm:$0xff]
  %v354 = vld [vmem:[%s7 + $0x108] sm:$0xff]
  %v355 = vld [vmem:[%s7 + $0x110] sm:$0xff]
  %v356 = vld [vmem:[%s7 + $0x118] sm:$0xff]
  %v357 = vld [vmem:[%s7 + $0x120] sm:$0xff]
  %v358 = vld [vmem:[%s7 + $0x128] sm:$0xff]
  %v359 = vld [vmem:[%s7 + $0x130] sm:$0xff]
  %v360 = vld [vmem:[%s7 + $0x138] sm:$0xff]
  %v361 = vld [vmem:[%s7 + $0x140] sm:$0xff]
  %v362 = vld [vmem:[%s7 + $0x148] sm:$0xff]
  %v363 = vld [vmem:[%s7 + $0x150] sm:$0xff]
  %v364 = vld [vmem:[%s7 + $0x158] sm:$0xff]
  %v365 = vld [vmem:[%s7 + $0x160] sm:$0xff]
  %v366 = vld [vmem:[%s7 + $0x168] sm:$0xff]
  %v367 = vld [vmem:[%s7 + $0x170] sm:$0xff]
  %v368 = vld [vmem:[%s7 + $0x178] sm:$0xff]
  %v369 = vld [vmem:[%s7 + $0x180] sm:$0xff]
  %v370 = vld [vmem:[%s7 + $0x188] sm:$0xff]
  %v371 = vld [vmem:[%s7 + $0x190] sm:$0xff]
  %v372 = vld [vmem:[%s7 + $0x198] sm:$0xff]
  %v373 = vld [vmem:[%s7 + $0x1a0] sm:$0xff]
  %v374 = vld [vmem:[%s7 + $0x1a8] sm:$0xff]
  %v375 = vld [vmem:[%s7 + $0x1b0] sm:$0xff]
  %v376 = vld [vmem:[%s7 + $0x1b8] sm:$0xff]
  %v377 = vld [vmem:[%s7 + $0x1c0] sm:$0xff]
  %v378 = vld [vmem:[%s7 + $0x1c8] sm:$0xff]
  %v379 = vld [vmem:[%s7 + $0x1d0] sm:$0xff]
  %v380 = vld [vmem:[%s7 + $0x1d8] sm:$0xff]
  %v381 = vld [vmem:[%s7 + $0x1e0] sm:$0xff]
  %v382 = vld [vmem:[%s7 + $0x1e8] sm:$0xff]
  %v383 = vld [vmem:[%s7 + $0x1f0] sm:$0xff]
  %v384 = vld [vmem:[%s7 + $0x1f8] sm:$0xff]
  %v385 = vld [vmem:[%s8] sm:$0xf]
  %v387 = vlaneseq
  %v388 = vshrl.u32 %v387, 7
  %v389 = vsub.s32 0, %v388
  %v390 = vrot.slane %v385, %v389
  %v391 = vlaneseq
  %v392 = vshrl.u32 %v391, 7
  %v393 = vsub.s32 1, %v392
  %v394 = vrot.slane %v385, %v393
  %v395 = vlaneseq
  %v396 = vshrl.u32 %v395, 7
  %v397 = vsub.s32 2, %v396
  %v398 = vrot.slane %v385, %v397
  %v399 = vlaneseq
  %v400 = vshrl.u32 %v399, 7
  %v401 = vsub.s32 3, %v400
  %v402 = vrot.slane %v385, %v401
  %v471 = vunpack.c.l.b16 %v321
  %v472 = vunpack.c.h.b16 %v321
  %v473 = vunpack.c.l.b16 %v322
  %v474 = vunpack.c.h.b16 %v322
  %v475 = vunpack.c.l.b16 %v323
  %v476 = vunpack.c.h.b16 %v323
  %v477 = vunpack.c.l.b16 %v324
  %v478 = vunpack.c.h.b16 %v324
  %v479 = vunpack.c.l.b16 %v325
  %v480 = vunpack.c.h.b16 %v325
  %v481 = vunpack.c.l.b16 %v326
  %v482 = vunpack.c.h.b16 %v326
  %v483 = vunpack.c.l.b16 %v327
  %v484 = vunpack.c.h.b16 %v327
  %v485 = vunpack.c.l.b16 %v328
  %v486 = vunpack.c.h.b16 %v328
  %v487 = vunpack.c.l.b16 %v329
  %v488 = vunpack.c.h.b16 %v329
  %v489 = vunpack.c.l.b16 %v330
  %v490 = vunpack.c.h.b16 %v330
  %v491 = vunpack.c.l.b16 %v331
  %v492 = vunpack.c.h.b16 %v331
  %v493 = vunpack.c.l.b16 %v332
  %v494 = vunpack.c.h.b16 %v332
  %v495 = vunpack.c.l.b16 %v333
  %v496 = vunpack.c.h.b16 %v333
  %v497 = vunpack.c.l.b16 %v334
  %v498 = vunpack.c.h.b16 %v334
  %v499 = vunpack.c.l.b16 %v335
  %v500 = vunpack.c.h.b16 %v335
  %v501 = vunpack.c.l.b16 %v336
  %v502 = vunpack.c.h.b16 %v336
  %v503 = vunpack.c.l.b16 %v337
  %v504 = vunpack.c.h.b16 %v337
  %v505 = vunpack.c.l.b16 %v338
  %v506 = vunpack.c.h.b16 %v338
  %v507 = vunpack.c.l.b16 %v339
  %v508 = vunpack.c.h.b16 %v339
  %v509 = vunpack.c.l.b16 %v340
  %v510 = vunpack.c.h.b16 %v340
  %v511 = vunpack.c.l.b16 %v341
  %v512 = vunpack.c.h.b16 %v341
  %v513 = vunpack.c.l.b16 %v342
  %v514 = vunpack.c.h.b16 %v342
  %v515 = vunpack.c.l.b16 %v343
  %v516 = vunpack.c.h.b16 %v343
  %v517 = vunpack.c.l.b16 %v344
  %v518 = vunpack.c.h.b16 %v344
  %v519 = vunpack.c.l.b16 %v345
  %v520 = vunpack.c.h.b16 %v345
  %v521 = vunpack.c.l.b16 %v346
  %v522 = vunpack.c.h.b16 %v346
  %v523 = vunpack.c.l.b16 %v347
  %v524 = vunpack.c.h.b16 %v347
  %v525 = vunpack.c.l.b16 %v348
  %v526 = vunpack.c.h.b16 %v348
  %v527 = vunpack.c.l.b16 %v349
  %v528 = vunpack.c.h.b16 %v349
  %v529 = vunpack.c.l.b16 %v350
  %v530 = vunpack.c.h.b16 %v350
  %v531 = vunpack.c.l.b16 %v351
  %v532 = vunpack.c.h.b16 %v351
  %v533 = vunpack.c.l.b16 %v352
  %v534 = vunpack.c.h.b16 %v352
  %v535 = vunpack.c.l.b16 %v353
  %v536 = vunpack.c.h.b16 %v353
  %v537 = vunpack.c.l.b16 %v354
  %v538 = vunpack.c.h.b16 %v354
  %v539 = vunpack.c.l.b16 %v355
  %v540 = vunpack.c.h.b16 %v355
  %v541 = vunpack.c.l.b16 %v356
  %v542 = vunpack.c.h.b16 %v356
  %v543 = vunpack.c.l.b16 %v357
  %v544 = vunpack.c.h.b16 %v357
  %v545 = vunpack.c.l.b16 %v358
  %v546 = vunpack.c.h.b16 %v358
  %v547 = vunpack.c.l.b16 %v359
  %v548 = vunpack.c.h.b16 %v359
  %v549 = vunpack.c.l.b16 %v360
  %v550 = vunpack.c.h.b16 %v360
  %v551 = vunpack.c.l.b16 %v361
  %v552 = vunpack.c.h.b16 %v361
  %v553 = vunpack.c.l.b16 %v362
  %v554 = vunpack.c.h.b16 %v362
  %v555 = vunpack.c.l.b16 %v363
  %v556 = vunpack.c.h.b16 %v363
  %v557 = vunpack.c.l.b16 %v364
  %v558 = vunpack.c.h.b16 %v364
  %v559 = vunpack.c.l.b16 %v365
  %v560 = vunpack.c.h.b16 %v365
  %v561 = vunpack.c.l.b16 %v366
  %v562 = vunpack.c.h.b16 %v366
  %v563 = vunpack.c.l.b16 %v367
  %v564 = vunpack.c.h.b16 %v367
  %v565 = vunpack.c.l.b16 %v368
  %v566 = vunpack.c.h.b16 %v368
  %v567 = vunpack.c.l.b16 %v369
  %v568 = vunpack.c.h.b16 %v369
  %v569 = vunpack.c.l.b16 %v370
  %v570 = vunpack.c.h.b16 %v370
  %v571 = vunpack.c.l.b16 %v371
  %v572 = vunpack.c.h.b16 %v371
  %v573 = vunpack.c.l.b16 %v372
  %v574 = vunpack.c.h.b16 %v372
  %v575 = vunpack.c.l.b16 %v373
  %v576 = vunpack.c.h.b16 %v373
  %v577 = vunpack.c.l.b16 %v374
  %v578 = vunpack.c.h.b16 %v374
  %v579 = vunpack.c.l.b16 %v375
  %v580 = vunpack.c.h.b16 %v375
  %v581 = vunpack.c.l.b16 %v376
  %v582 = vunpack.c.h.b16 %v376
  %v583 = vunpack.c.l.b16 %v377
  %v584 = vunpack.c.h.b16 %v377
  %v585 = vunpack.c.l.b16 %v378
  %v586 = vunpack.c.h.b16 %v378
  %v587 = vunpack.c.l.b16 %v379
  %v588 = vunpack.c.h.b16 %v379
  %v589 = vunpack.c.l.b16 %v380
  %v590 = vunpack.c.h.b16 %v380
  %v591 = vunpack.c.l.b16 %v381
  %v592 = vunpack.c.h.b16 %v381
  %v593 = vunpack.c.l.b16 %v382
  %v594 = vunpack.c.h.b16 %v382
  %v595 = vunpack.c.l.b16 %v383
  %v596 = vunpack.c.h.b16 %v383
  %v597 = vunpack.c.l.b16 %v384
  %v598 = vunpack.c.h.b16 %v384
  %v599 = vpack.c.b16 %v475, %v471
  %v600 = vpack.c.b16 %v476, %v472
  %v601 = vpack.c.b16 %v477, %v473
  %v602 = vpack.c.b16 %v478, %v474
  %v603 = vpack.c.b16 %v483, %v479
  %v604 = vpack.c.b16 %v484, %v480
  %v605 = vpack.c.b16 %v485, %v481
  %v606 = vpack.c.b16 %v486, %v482
  %v607 = vpack.c.b16 %v491, %v487
  %v608 = vpack.c.b16 %v492, %v488
  %v609 = vpack.c.b16 %v493, %v489
  %v610 = vpack.c.b16 %v494, %v490
  %v611 = vpack.c.b16 %v499, %v495
  %v612 = vpack.c.b16 %v500, %v496
  %v613 = vpack.c.b16 %v501, %v497
  %v614 = vpack.c.b16 %v502, %v498
  %v615 = vpack.c.b16 %v507, %v503
  %v616 = vpack.c.b16 %v508, %v504
  %v617 = vpack.c.b16 %v509, %v505
  %v618 = vpack.c.b16 %v510, %v506
  %v619 = vpack.c.b16 %v515, %v511
  %v620 = vpack.c.b16 %v516, %v512
  %v621 = vpack.c.b16 %v517, %v513
  %v622 = vpack.c.b16 %v518, %v514
  %v623 = vpack.c.b16 %v523, %v519
  %v624 = vpack.c.b16 %v524, %v520
  %v625 = vpack.c.b16 %v525, %v521
  %v626 = vpack.c.b16 %v526, %v522
  %v627 = vpack.c.b16 %v531, %v527
  %v628 = vpack.c.b16 %v532, %v528
  %v629 = vpack.c.b16 %v533, %v529
  %v630 = vpack.c.b16 %v534, %v530
  %v631 = vpack.c.b16 %v539, %v535
  %v632 = vpack.c.b16 %v540, %v536
  %v633 = vpack.c.b16 %v541, %v537
  %v634 = vpack.c.b16 %v542, %v538
  %v635 = vpack.c.b16 %v547, %v543
  %v636 = vpack.c.b16 %v548, %v544
  %v637 = vpack.c.b16 %v549, %v545
  %v638 = vpack.c.b16 %v550, %v546
  %v639 = vpack.c.b16 %v555, %v551
  %v640 = vpack.c.b16 %v556, %v552
  %v641 = vpack.c.b16 %v557, %v553
  %v642 = vpack.c.b16 %v558, %v554
  %v643 = vpack.c.b16 %v563, %v559
  %v644 = vpack.c.b16 %v564, %v560
  %v645 = vpack.c.b16 %v565, %v561
  %v646 = vpack.c.b16 %v566, %v562
  %v647 = vpack.c.b16 %v571, %v567
  %v648 = vpack.c.b16 %v572, %v568
  %v649 = vpack.c.b16 %v573, %v569
  %v650 = vpack.c.b16 %v574, %v570
  %v651 = vpack.c.b16 %v579, %v575
  %v652 = vpack.c.b16 %v580, %v576
  %v653 = vpack.c.b16 %v581, %v577
  %v654 = vpack.c.b16 %v582, %v578
  %v655 = vpack.c.b16 %v587, %v583
  %v656 = vpack.c.b16 %v588, %v584
  %v657 = vpack.c.b16 %v589, %v585
  %v658 = vpack.c.b16 %v590, %v586
  %v659 = vpack.c.b16 %v595, %v591
  %v660 = vpack.c.b16 %v596, %v592
  %v661 = vpack.c.b16 %v597, %v593
  %v662 = vpack.c.b16 %v598, %v594
  %727 = vmatprep.subr.bf16.mxu0 %v628
  %728 = vmatpush1.bf16.msra.mxu0 %v627
  %729 = vmatprep.subr.bf16.mxu0 %v624
  %730 = vmatpush1.bf16.msra.mxu0 %v623
  %731 = vmatprep.subr.bf16.mxu0 %v620
  %732 = vmatpush1.bf16.msra.mxu0 %v619
  %733 = vmatprep.subr.bf16.mxu0 %v616
  %734 = vmatpush1.bf16.msra.mxu0 %v615
  %735 = vmatprep.subr.bf16.mxu0 %v612
  %736 = vmatpush1.bf16.msra.mxu0 %v611
  %737 = vmatprep.subr.bf16.mxu0 %v608
  %738 = vmatpush1.bf16.msra.mxu0 %v607
  %739 = vmatprep.subr.bf16.mxu0 %v604
  %740 = vmatpush1.bf16.msra.mxu0 %v603
  %741 = vmatprep.subr.bf16.mxu0 %v600
  %742 = vmatpush1.bf16.msra.mxu0 %v599
  %743 = vmatprep.subr.bf16.mxu0 %v660
  %744 = vmatpush2.bf16.msra.mxu0 %v659
  %745 = vmatprep.subr.bf16.mxu0 %v656
  %746 = vmatpush2.bf16.msra.mxu0 %v655
  %747 = vmatprep.subr.bf16.mxu0 %v652
  %748 = vmatpush2.bf16.msra.mxu0 %v651
  %749 = vmatprep.subr.bf16.mxu0 %v648
  %750 = vmatpush2.bf16.msra.mxu0 %v647
  %751 = vmatprep.subr.bf16.mxu0 %v644
  %752 = vmatpush2.bf16.msra.mxu0 %v643
  %753 = vmatprep.subr.bf16.mxu0 %v640
  %754 = vmatpush2.bf16.msra.mxu0 %v639
  %755 = vmatprep.subr.bf16.mxu0 %v636
  %756 = vmatpush2.bf16.msra.mxu0 %v635
  %757 = vmatprep.subr.bf16.mxu0 %v632
  %758 = vmatpush2.bf16.msra.mxu0 %v631
  %759 = vmatprep.mubr.bf16.mxu0 %v320
  %760 = vmatmul.mubr.bf16.gmra.mxu0 %v319
  %v761 = vpop.f32.mrf.mxu0
  %v762 = vadd.f32 %v390, %v761
  %v763 = vpop.f32.mrf.mxu0
  %v764 = vadd.f32 %v394, %v763
  %v765 = vpop.f32.mrf.mxu0
  %v766 = vpop.f32.mrf.mxu0
  %767 = vdwg.mxu0
  %768 = vmatprep.subr.bf16.mxu0 %v630
  %769 = vmatpush1.bf16.msra.mxu0 %v629
  %770 = vmatprep.subr.bf16.mxu0 %v626
  %771 = vmatpush1.bf16.msra.mxu0 %v625
  %772 = vmatprep.subr.bf16.mxu0 %v622
  %773 = vmatpush1.bf16.msra.mxu0 %v621
  %774 = vmatprep.subr.bf16.mxu0 %v618
  %775 = vmatpush1.bf16.msra.mxu0 %v617
  %776 = vmatprep.subr.bf16.mxu0 %v614
  %777 = vmatpush1.bf16.msra.mxu0 %v613
  %778 = vmatprep.subr.bf16.mxu0 %v610
  %779 = vmatpush1.bf16.msra.mxu0 %v609
  %780 = vmatprep.subr.bf16.mxu0 %v606
  %781 = vmatpush1.bf16.msra.mxu0 %v605
  %782 = vmatprep.subr.bf16.mxu0 %v602
  %783 = vmatpush1.bf16.msra.mxu0 %v601
  %784 = vmatprep.subr.bf16.mxu0 %v662
  %785 = vmatpush2.bf16.msra.mxu0 %v661
  %786 = vmatprep.subr.bf16.mxu0 %v658
  %787 = vmatpush2.bf16.msra.mxu0 %v657
  %788 = vmatprep.subr.bf16.mxu0 %v654
  %789 = vmatpush2.bf16.msra.mxu0 %v653
  %790 = vmatprep.subr.bf16.mxu0 %v650
  %791 = vmatpush2.bf16.msra.mxu0 %v649
  %792 = vmatprep.subr.bf16.mxu0 %v646
  %793 = vmatpush2.bf16.msra.mxu0 %v645
  %794 = vmatprep.subr.bf16.mxu0 %v642
  %795 = vmatpush2.bf16.msra.mxu0 %v641
  %796 = vmatprep.subr.bf16.mxu0 %v638
  %797 = vmatpush2.bf16.msra.mxu0 %v637
  %798 = vmatprep.subr.bf16.mxu0 %v634
  %799 = vmatpush2.bf16.msra.mxu0 %v633
  %800 = vmatprep.mubr.bf16.mxu0 %v320
  %801 = vmatmul.mubr.bf16.gmra.mxu0 %v319
  %v802 = vpop.f32.mrf.mxu0
  %v803 = vadd.f32 %v398, %v802
  %v804 = vpop.f32.mrf.mxu0
  %v805 = vadd.f32 %v402, %v804
  %v806 = vpop.f32.mrf.mxu0
  %v807 = vpop.f32.mrf.mxu0
  %808 = vdwg.mxu0
  %v809 = vmax.f32 %v762, 0.0
  %v810 = vmax.f32 %v764, 0.0
  %v811 = vmax.f32 %v803, 0.0
  %v812 = vmax.f32 %v805, 0.0
  %v813 = vpack.c.bf16 %v809, %v809
  %v814 = vpack.c.bf16 %v810, %v810
  %v815 = vpack.c.bf16 %v811, %v811
  %v816 = vpack.c.bf16 %v812, %v812
  %v817 = vld [vmem:[%s9] sm:$0xff]
  %v818 = vld [vmem:[%s9 + $0x8] sm:$0xff]
  %v819 = vld [vmem:[%s9 + $0x10] sm:$0xff]
  %v820 = vld [vmem:[%s9 + $0x18] sm:$0xf]
  %v821 = vld [vmem:[%s9 + $0x1c] sm:$0xff]
  %v822 = vld [vmem:[%s9 + $0x24] sm:$0xff]
  %v823 = vld [vmem:[%s9 + $0x2c] sm:$0xff]
  %v824 = vld [vmem:[%s9 + $0x34] sm:$0xf]
  %v825 = vld [vmem:[%s9 + $0x38] sm:$0xff]
  %v826 = vld [vmem:[%s9 + $0x40] sm:$0xff]
  %v827 = vld [vmem:[%s9 + $0x48] sm:$0xff]
  %v828 = vld [vmem:[%s9 + $0x50] sm:$0xf]
  %v829 = vld [vmem:[%s9 + $0x54] sm:$0xff]
  %v830 = vld [vmem:[%s9 + $0x5c] sm:$0xff]
  %v831 = vld [vmem:[%s9 + $0x64] sm:$0xff]
  %v832 = vld [vmem:[%s9 + $0x6c] sm:$0xf]
  %v833 = vld [vmem:[%s9 + $0x70] sm:$0xff]
  %v834 = vld [vmem:[%s9 + $0x78] sm:$0xff]
  %v835 = vld [vmem:[%s9 + $0x80] sm:$0xff]
  %v836 = vld [vmem:[%s9 + $0x88] sm:$0xf]
  %v837 = vld [vmem:[%s9 + $0x8c] sm:$0xff]
  %v838 = vld [vmem:[%s9 + $0x94] sm:$0xff]
  %v839 = vld [vmem:[%s9 + $0x9c] sm:$0xff]
  %v840 = vld [vmem:[%s9 + $0xa4] sm:$0xf]
  %v841 = vld [vmem:[%s9 + $0xa8] sm:$0xff]
  %v842 = vld [vmem:[%s9 + $0xb0] sm:$0xff]
  %v843 = vld [vmem:[%s9 + $0xb8] sm:$0xff]
  %v844 = vld [vmem:[%s9 + $0xc0] sm:$0xf]
  %v845 = vld [vmem:[%s9 + $0xc4] sm:$0xff]
  %v846 = vld [vmem:[%s9 + $0xcc] sm:$0xff]
  %v847 = vld [vmem:[%s9 + $0xd4] sm:$0xff]
  %v848 = vld [vmem:[%s9 + $0xdc] sm:$0xf]
  %v849 = vld [vmem:[%s9 + $0xe0] sm:$0xff]
  %v850 = vld [vmem:[%s9 + $0xe8] sm:$0xff]
  %v851 = vld [vmem:[%s9 + $0xf0] sm:$0xff]
  %v852 = vld [vmem:[%s9 + $0xf8] sm:$0xf]
  %v853 = vld [vmem:[%s9 + $0xfc] sm:$0xff]
  %v854 = vld [vmem:[%s9 + $0x104] sm:$0xff]
  %v855 = vld [vmem:[%s9 + $0x10c] sm:$0xff]
  %v856 = vld [vmem:[%s9 + $0x114] sm:$0xf]
  %v857 = vld [vmem:[%s9 + $0x118] sm:$0xff]
  %v858 = vld [vmem:[%s9 + $0x120] sm:$0xff]
  %v859 = vld [vmem:[%s9 + $0x128] sm:$0xff]
  %v860 = vld [vmem:[%s9 + $0x130] sm:$0xf]
  %v861 = vld [vmem:[%s9 + $0x134] sm:$0xff]
  %v862 = vld [vmem:[%s9 + $0x13c] sm:$0xff]
  %v863 = vld [vmem:[%s9 + $0x144] sm:$0xff]
  %v864 = vld [vmem:[%s9 + $0x14c] sm:$0xf]
  %v865 = vld [vmem:[%s9 + $0x150] sm:$0xff]
  %v866 = vld [vmem:[%s9 + $0x158] sm:$0xff]
  %v867 = vld [vmem:[%s9 + $0x160] sm:$0xff]
  %v868 = vld [vmem:[%s9 + $0x168] sm:$0xf]
  %v869 = vld [vmem:[%s9 + $0x16c] sm:$0xff]
  %v870 = vld [vmem:[%s9 + $0x174] sm:$0xff]
  %v871 = vld [vmem:[%s9 + $0x17c] sm:$0xff]
  %v872 = vld [vmem:[%s9 + $0x184] sm:$0xf]
  %v873 = vld [vmem:[%s9 + $0x188] sm:$0xff]
  %v874 = vld [vmem:[%s9 + $0x190] sm:$0xff]
  %v875 = vld [vmem:[%s9 + $0x198] sm:$0xff]
  %v876 = vld [vmem:[%s9 + $0x1a0] sm:$0xf]
  %v877 = vld [vmem:[%s9 + $0x1a4] sm:$0xff]
  %v878 = vld [vmem:[%s9 + $0x1ac] sm:$0xff]
  %v879 = vld [vmem:[%s9 + $0x1b4] sm:$0xff]
  %v880 = vld [vmem:[%s9 + $0x1bc] sm:$0xf]
  %v881 = vld [vmem:[%s9 + $0x1c0] sm:$0xff]
  %v882 = vld [vmem:[%s9 + $0x1c8] sm:$0xff]
  %v883 = vld [vmem:[%s9 + $0x1d0] sm:$0xff]
  %v884 = vld [vmem:[%s9 + $0x1d8] sm:$0xf]
  %v885 = vld [vmem:[%s9 + $0x1dc] sm:$0xff]
  %v886 = vld [vmem:[%s9 + $0x1e4] sm:$0xff]
  %v887 = vld [vmem:[%s9 + $0x1ec] sm:$0xff]
  %v888 = vld [vmem:[%s9 + $0x1f4] sm:$0xf]
  %v889 = vld [vmem:[%s9 + $0x1f8] sm:$0xff]
  %v890 = vld [vmem:[%s9 + $0x200] sm:$0xff]
  %v891 = vld [vmem:[%s9 + $0x208] sm:$0xff]
  %v892 = vld [vmem:[%s9 + $0x210] sm:$0xf]
  %v893 = vld [vmem:[%s9 + $0x214] sm:$0xff]
  %v894 = vld [vmem:[%s9 + $0x21c] sm:$0xff]
  %v895 = vld [vmem:[%s9 + $0x224] sm:$0xff]
  %v896 = vld [vmem:[%s9 + $0x22c] sm:$0xf]
  %v897 = vld [vmem:[%s9 + $0x230] sm:$0xff]
  %v898 = vld [vmem:[%s9 + $0x238] sm:$0xff]
  %v899 = vld [vmem:[%s9 + $0x240] sm:$0xff]
  %v900 = vld [vmem:[%s9 + $0x248] sm:$0xf]
  %v901 = vld [vmem:[%s9 + $0x24c] sm:$0xff]
  %v902 = vld [vmem:[%s9 + $0x254] sm:$0xff]
  %v903 = vld [vmem:[%s9 + $0x25c] sm:$0xff]
  %v904 = vld [vmem:[%s9 + $0x264] sm:$0xf]
  %v905 = vld [vmem:[%s9 + $0x268] sm:$0xff]
  %v906 = vld [vmem:[%s9 + $0x270] sm:$0xff]
  %v907 = vld [vmem:[%s9 + $0x278] sm:$0xff]
  %v908 = vld [vmem:[%s9 + $0x280] sm:$0xf]
  %v909 = vld [vmem:[%s9 + $0x284] sm:$0xff]
  %v910 = vld [vmem:[%s9 + $0x28c] sm:$0xff]
  %v911 = vld [vmem:[%s9 + $0x294] sm:$0xff]
  %v912 = vld [vmem:[%s9 + $0x29c] sm:$0xf]
  %v913 = vld [vmem:[%s9 + $0x2a0] sm:$0xff]
  %v914 = vld [vmem:[%s9 + $0x2a8] sm:$0xff]
  %v915 = vld [vmem:[%s9 + $0x2b0] sm:$0xff]
  %v916 = vld [vmem:[%s9 + $0x2b8] sm:$0xf]
  %v917 = vld [vmem:[%s9 + $0x2bc] sm:$0xff]
  %v918 = vld [vmem:[%s9 + $0x2c4] sm:$0xff]
  %v919 = vld [vmem:[%s9 + $0x2cc] sm:$0xff]
  %v920 = vld [vmem:[%s9 + $0x2d4] sm:$0xf]
  %v921 = vld [vmem:[%s9 + $0x2d8] sm:$0xff]
  %v922 = vld [vmem:[%s9 + $0x2e0] sm:$0xff]
  %v923 = vld [vmem:[%s9 + $0x2e8] sm:$0xff]
  %v924 = vld [vmem:[%s9 + $0x2f0] sm:$0xf]
  %v925 = vld [vmem:[%s9 + $0x2f4] sm:$0xff]
  %v926 = vld [vmem:[%s9 + $0x2fc] sm:$0xff]
  %v927 = vld [vmem:[%s9 + $0x304] sm:$0xff]
  %v928 = vld [vmem:[%s9 + $0x30c] sm:$0xf]
  %v929 = vld [vmem:[%s9 + $0x310] sm:$0xff]
  %v930 = vld [vmem:[%s9 + $0x318] sm:$0xff]
  %v931 = vld [vmem:[%s9 + $0x320] sm:$0xff]
  %v932 = vld [vmem:[%s9 + $0x328] sm:$0xf]
  %v933 = vld [vmem:[%s9 + $0x32c] sm:$0xff]
  %v934 = vld [vmem:[%s9 + $0x334] sm:$0xff]
  %v935 = vld [vmem:[%s9 + $0x33c] sm:$0xff]
  %v936 = vld [vmem:[%s9 + $0x344] sm:$0xf]
  %v937 = vld [vmem:[%s9 + $0x348] sm:$0xff]
  %v938 = vld [vmem:[%s9 + $0x350] sm:$0xff]
  %v939 = vld [vmem:[%s9 + $0x358] sm:$0xff]
  %v940 = vld [vmem:[%s9 + $0x360] sm:$0xf]
  %v941 = vld [vmem:[%s9 + $0x364] sm:$0xff]
  %v942 = vld [vmem:[%s9 + $0x36c] sm:$0xff]
  %v943 = vld [vmem:[%s9 + $0x374] sm:$0xff]
  %v944 = vld [vmem:[%s9 + $0x37c] sm:$0xf]
  %v945 = vld [vmem:[%s9 + $0x380] sm:$0xff]
  %v946 = vld [vmem:[%s9 + $0x388] sm:$0xff]
  %v947 = vld [vmem:[%s9 + $0x390] sm:$0xff]
  %v948 = vld [vmem:[%s9 + $0x398] sm:$0xf]
  %v949 = vld [vmem:[%s9 + $0x39c] sm:$0xff]
  %v950 = vld [vmem:[%s9 + $0x3a4] sm:$0xff]
  %v951 = vld [vmem:[%s9 + $0x3ac] sm:$0xff]
  %v952 = vld [vmem:[%s9 + $0x3b4] sm:$0xf]
  %v953 = vld [vmem:[%s9 + $0x3b8] sm:$0xff]
  %v954 = vld [vmem:[%s9 + $0x3c0] sm:$0xff]
  %v955 = vld [vmem:[%s9 + $0x3c8] sm:$0xff]
  %v956 = vld [vmem:[%s9 + $0x3d0] sm:$0xf]
  %v957 = vld [vmem:[%s9 + $0x3d4] sm:$0xff]
  %v958 = vld [vmem:[%s9 + $0x3dc] sm:$0xff]
  %v959 = vld [vmem:[%s9 + $0x3e4] sm:$0xff]
  %v960 = vld [vmem:[%s9 + $0x3ec] sm:$0xf]
  %v961 = vld [vmem:[%s9 + $0x3f0] sm:$0xff]
  %v962 = vld [vmem:[%s9 + $0x3f8] sm:$0xff]
  %v963 = vld [vmem:[%s9 + $0x400] sm:$0xff]
  %v964 = vld [vmem:[%s9 + $0x408] sm:$0xf]
  %v965 = vld [vmem:[%s9 + $0x40c] sm:$0xff]
  %v966 = vld [vmem:[%s9 + $0x414] sm:$0xff]
  %v967 = vld [vmem:[%s9 + $0x41c] sm:$0xff]
  %v968 = vld [vmem:[%s9 + $0x424] sm:$0xf]
  %v969 = vld [vmem:[%s9 + $0x428] sm:$0xff]
  %v970 = vld [vmem:[%s9 + $0x430] sm:$0xff]
  %v971 = vld [vmem:[%s9 + $0x438] sm:$0xff]
  %v972 = vld [vmem:[%s9 + $0x440] sm:$0xf]
  %v973 = vld [vmem:[%s9 + $0x444] sm:$0xff]
  %v974 = vld [vmem:[%s9 + $0x44c] sm:$0xff]
  %v975 = vld [vmem:[%s9 + $0x454] sm:$0xff]
  %v976 = vld [vmem:[%s9 + $0x45c] sm:$0xf]
  %v977 = vld [vmem:[%s9 + $0x460] sm:$0xff]
  %v978 = vld [vmem:[%s9 + $0x468] sm:$0xff]
  %v979 = vld [vmem:[%s9 + $0x470] sm:$0xff]
  %v980 = vld [vmem:[%s9 + $0x478] sm:$0xf]
  %v981 = vld [vmem:[%s9 + $0x47c] sm:$0xff]
  %v982 = vld [vmem:[%s9 + $0x484] sm:$0xff]
  %v983 = vld [vmem:[%s9 + $0x48c] sm:$0xff]
  %v984 = vld [vmem:[%s9 + $0x494] sm:$0xf]
  %v985 = vld [vmem:[%s9 + $0x498] sm:$0xff]
  %v986 = vld [vmem:[%s9 + $0x4a0] sm:$0xff]
  %v987 = vld [vmem:[%s9 + $0x4a8] sm:$0xff]
  %v988 = vld [vmem:[%s9 + $0x4b0] sm:$0xf]
  %v989 = vld [vmem:[%s9 + $0x4b4] sm:$0xff]
  %v990 = vld [vmem:[%s9 + $0x4bc] sm:$0xff]
  %v991 = vld [vmem:[%s9 + $0x4c4] sm:$0xff]
  %v992 = vld [vmem:[%s9 + $0x4cc] sm:$0xf]
  %v993 = vld [vmem:[%s9 + $0x4d0] sm:$0xff]
  %v994 = vld [vmem:[%s9 + $0x4d8] sm:$0xff]
  %v995 = vld [vmem:[%s9 + $0x4e0] sm:$0xff]
  %v996 = vld [vmem:[%s9 + $0x4e8] sm:$0xf]
  %v997 = vld [vmem:[%s9 + $0x4ec] sm:$0xff]
  %v998 = vld [vmem:[%s9 + $0x4f4] sm:$0xff]
  %v999 = vld [vmem:[%s9 + $0x4fc] sm:$0xff]
  %v1000 = vld [vmem:[%s9 + $0x504] sm:$0xf]
  %v1001 = vld [vmem:[%s9 + $0x508] sm:$0xff]
  %v1002 = vld [vmem:[%s9 + $0x510] sm:$0xff]
  %v1003 = vld [vmem:[%s9 + $0x518] sm:$0xff]
  %v1004 = vld [vmem:[%s9 + $0x520] sm:$0xf]
  %v1005 = vld [vmem:[%s9 + $0x524] sm:$0xff]
  %v1006 = vld [vmem:[%s9 + $0x52c] sm:$0xff]
  %v1007 = vld [vmem:[%s9 + $0x534] sm:$0xff]
  %v1008 = vld [vmem:[%s9 + $0x53c] sm:$0xf]
  %v1009 = vld [vmem:[%s9 + $0x540] sm:$0xff]
  %v1010 = vld [vmem:[%s9 + $0x548] sm:$0xff]
  %v1011 = vld [vmem:[%s9 + $0x550] sm:$0xff]
  %v1012 = vld [vmem:[%s9 + $0x558] sm:$0xf]
  %v1013 = vld [vmem:[%s9 + $0x55c] sm:$0xff]
  %v1014 = vld [vmem:[%s9 + $0x564] sm:$0xff]
  %v1015 = vld [vmem:[%s9 + $0x56c] sm:$0xff]
  %v1016 = vld [vmem:[%s9 + $0x574] sm:$0xf]
  %v1017 = vld [vmem:[%s9 + $0x578] sm:$0xff]
  %v1018 = vld [vmem:[%s9 + $0x580] sm:$0xff]
  %v1019 = vld [vmem:[%s9 + $0x588] sm:$0xff]
  %v1020 = vld [vmem:[%s9 + $0x590] sm:$0xf]
  %v1021 = vld [vmem:[%s9 + $0x594] sm:$0xff]
  %v1022 = vld [vmem:[%s9 + $0x59c] sm:$0xff]
  %v1023 = vld [vmem:[%s9 + $0x5a4] sm:$0xff]
  %v1024 = vld [vmem:[%s9 + $0x5ac] sm:$0xf]
  %v1025 = vld [vmem:[%s9 + $0x5b0] sm:$0xff]
  %v1026 = vld [vmem:[%s9 + $0x5b8] sm:$0xff]
  %v1027 = vld [vmem:[%s9 + $0x5c0] sm:$0xff]
  %v1028 = vld [vmem:[%s9 + $0x5c8] sm:$0xf]
  %v1029 = vld [vmem:[%s9 + $0x5cc] sm:$0xff]
  %v1030 = vld [vmem:[%s9 + $0x5d4] sm:$0xff]
  %v1031 = vld [vmem:[%s9 + $0x5dc] sm:$0xff]
  %v1032 = vld [vmem:[%s9 + $0x5e4] sm:$0xf]
  %v1033 = vld [vmem:[%s9 + $0x5e8] sm:$0xff]
  %v1034 = vld [vmem:[%s9 + $0x5f0] sm:$0xff]
  %v1035 = vld [vmem:[%s9 + $0x5f8] sm:$0xff]
  %v1036 = vld [vmem:[%s9 + $0x600] sm:$0xf]
  %v1037 = vld [vmem:[%s9 + $0x604] sm:$0xff]
  %v1038 = vld [vmem:[%s9 + $0x60c] sm:$0xff]
  %v1039 = vld [vmem:[%s9 + $0x614] sm:$0xff]
  %v1040 = vld [vmem:[%s9 + $0x61c] sm:$0xf]
  %v1041 = vld [vmem:[%s9 + $0x620] sm:$0xff]
  %v1042 = vld [vmem:[%s9 + $0x628] sm:$0xff]
  %v1043 = vld [vmem:[%s9 + $0x630] sm:$0xff]
  %v1044 = vld [vmem:[%s9 + $0x638] sm:$0xf]
  %v1045 = vld [vmem:[%s9 + $0x63c] sm:$0xff]
  %v1046 = vld [vmem:[%s9 + $0x644] sm:$0xff]
  %v1047 = vld [vmem:[%s9 + $0x64c] sm:$0xff]
  %v1048 = vld [vmem:[%s9 + $0x654] sm:$0xf]
  %v1049 = vld [vmem:[%s9 + $0x658] sm:$0xff]
  %v1050 = vld [vmem:[%s9 + $0x660] sm:$0xff]
  %v1051 = vld [vmem:[%s9 + $0x668] sm:$0xff]
  %v1052 = vld [vmem:[%s9 + $0x670] sm:$0xf]
  %v1053 = vld [vmem:[%s9 + $0x674] sm:$0xff]
  %v1054 = vld [vmem:[%s9 + $0x67c] sm:$0xff]
  %v1055 = vld [vmem:[%s9 + $0x684] sm:$0xff]
  %v1056 = vld [vmem:[%s9 + $0x68c] sm:$0xf]
  %v1057 = vld [vmem:[%s9 + $0x690] sm:$0xff]
  %v1058 = vld [vmem:[%s9 + $0x698] sm:$0xff]
  %v1059 = vld [vmem:[%s9 + $0x6a0] sm:$0xff]
  %v1060 = vld [vmem:[%s9 + $0x6a8] sm:$0xf]
  %v1061 = vld [vmem:[%s9 + $0x6ac] sm:$0xff]
  %v1062 = vld [vmem:[%s9 + $0x6b4] sm:$0xff]
  %v1063 = vld [vmem:[%s9 + $0x6bc] sm:$0xff]
  %v1064 = vld [vmem:[%s9 + $0x6c4] sm:$0xf]
  %v1065 = vld [vmem:[%s9 + $0x6c8] sm:$0xff]
  %v1066 = vld [vmem:[%s9 + $0x6d0] sm:$0xff]
  %v1067 = vld [vmem:[%s9 + $0x6d8] sm:$0xff]
  %v1068 = vld [vmem:[%s9 + $0x6e0] sm:$0xf]
  %v1069 = vld [vmem:[%s9 + $0x6e4] sm:$0xff]
  %v1070 = vld [vmem:[%s9 + $0x6ec] sm:$0xff]
  %v1071 = vld [vmem:[%s9 + $0x6f4] sm:$0xff]
  %v1072 = vld [vmem:[%s9 + $0x6fc] sm:$0xf]
  %v1073 = vld [vmem:[%s10] sm:$0x7f]
  %v1075 = vlaneseq
  %v1076 = vshrl.u32 %v1075, 7
  %v1077 = vsub.s32 0, %v1076
  %v1078 = vrot.slane %v1073, %v1077
  %v1079 = vlaneseq
  %v1080 = vshrl.u32 %v1079, 7
  %v1081 = vsub.s32 1, %v1080
  %v1082 = vrot.slane %v1073, %v1081
  %v1083 = vlaneseq
  %v1084 = vshrl.u32 %v1083, 7
  %v1085 = vsub.s32 2, %v1084
  %v1086 = vrot.slane %v1073, %v1085
  %v1087 = vlaneseq
  %v1088 = vshrl.u32 %v1087, 7
  %v1089 = vsub.s32 3, %v1088
  %v1090 = vrot.slane %v1073, %v1089
  %v1091 = vlaneseq
  %v1092 = vshrl.u32 %v1091, 7
  %v1093 = vsub.s32 4, %v1092
  %v1094 = vrot.slane %v1073, %v1093
  %v1095 = vlaneseq
  %v1096 = vshrl.u32 %v1095, 7
  %v1097 = vsub.s32 5, %v1096
  %v1098 = vrot.slane %v1073, %v1097
  %v1099 = vlaneseq
  %v1100 = vshrl.u32 %v1099, 7
  %v1101 = vsub.s32 6, %v1100
  %v1102 = vrot.slane %v1073, %v1101
  %v1366 = vunpack.c.l.b16 %v817
  %v1367 = vunpack.c.h.b16 %v817
  %v1368 = vunpack.c.l.b16 %v818
  %v1369 = vunpack.c.h.b16 %v818
  %v1370 = vunpack.c.l.b16 %v819
  %v1371 = vunpack.c.h.b16 %v819
  %v1372 = vunpack.c.l.b16 %v820
  %v1373 = vunpack.c.l.b16 %v821
  %v1374 = vunpack.c.h.b16 %v821
  %v1375 = vunpack.c.l.b16 %v822
  %v1376 = vunpack.c.h.b16 %v822
  %v1377 = vunpack.c.l.b16 %v823
  %v1378 = vunpack.c.h.b16 %v823
  %v1379 = vunpack.c.l.b16 %v824
  %v1380 = vunpack.c.l.b16 %v825
  %v1381 = vunpack.c.h.b16 %v825
  %v1382 = vunpack.c.l.b16 %v826
  %v1383 = vunpack.c.h.b16 %v826
  %v1384 = vunpack.c.l.b16 %v827
  %v1385 = vunpack.c.h.b16 %v827
  %v1386 = vunpack.c.l.b16 %v828
  %v1387 = vunpack.c.l.b16 %v829
  %v1388 = vunpack.c.h.b16 %v829
  %v1389 = vunpack.c.l.b16 %v830
  %v1390 = vunpack.c.h.b16 %v830
  %v1391 = vunpack.c.l.b16 %v831
  %v1392 = vunpack.c.h.b16 %v831
  %v1393 = vunpack.c.l.b16 %v832
  %v1394 = vunpack.c.l.b16 %v833
  %v1395 = vunpack.c.h.b16 %v833
  %v1396 = vunpack.c.l.b16 %v834
  %v1397 = vunpack.c.h.b16 %v834
  %v1398 = vunpack.c.l.b16 %v835
  %v1399 = vunpack.c.h.b16 %v835
  %v1400 = vunpack.c.l.b16 %v836
  %v1401 = vunpack.c.l.b16 %v837
  %v1402 = vunpack.c.h.b16 %v837
  %v1403 = vunpack.c.l.b16 %v838
  %v1404 = vunpack.c.h.b16 %v838
  %v1405 = vunpack.c.l.b16 %v839
  %v1406 = vunpack.c.h.b16 %v839
  %v1407 = vunpack.c.l.b16 %v840
  %v1408 = vunpack.c.l.b16 %v841
  %v1409 = vunpack.c.h.b16 %v841
  %v1410 = vunpack.c.l.b16 %v842
  %v1411 = vunpack.c.h.b16 %v842
  %v1412 = vunpack.c.l.b16 %v843
  %v1413 = vunpack.c.h.b16 %v843
  %v1414 = vunpack.c.l.b16 %v844
  %v1415 = vunpack.c.l.b16 %v845
  %v1416 = vunpack.c.h.b16 %v845
  %v1417 = vunpack.c.l.b16 %v846
  %v1418 = vunpack.c.h.b16 %v846
  %v1419 = vunpack.c.l.b16 %v847
  %v1420 = vunpack.c.h.b16 %v847
  %v1421 = vunpack.c.l.b16 %v848
  %v1422 = vunpack.c.l.b16 %v849
  %v1423 = vunpack.c.h.b16 %v849
  %v1424 = vunpack.c.l.b16 %v850
  %v1425 = vunpack.c.h.b16 %v850
  %v1426 = vunpack.c.l.b16 %v851
  %v1427 = vunpack.c.h.b16 %v851
  %v1428 = vunpack.c.l.b16 %v852
  %v1429 = vunpack.c.l.b16 %v853
  %v1430 = vunpack.c.h.b16 %v853
  %v1431 = vunpack.c.l.b16 %v854
  %v1432 = vunpack.c.h.b16 %v854
  %v1433 = vunpack.c.l.b16 %v855
  %v1434 = vunpack.c.h.b16 %v855
  %v1435 = vunpack.c.l.b16 %v856
  %v1436 = vunpack.c.l.b16 %v857
  %v1437 = vunpack.c.h.b16 %v857
  %v1438 = vunpack.c.l.b16 %v858
  %v1439 = vunpack.c.h.b16 %v858
  %v1440 = vunpack.c.l.b16 %v859
  %v1441 = vunpack.c.h.b16 %v859
  %v1442 = vunpack.c.l.b16 %v860
  %v1443 = vunpack.c.l.b16 %v861
  %v1444 = vunpack.c.h.b16 %v861
  %v1445 = vunpack.c.l.b16 %v862
  %v1446 = vunpack.c.h.b16 %v862
  %v1447 = vunpack.c.l.b16 %v863
  %v1448 = vunpack.c.h.b16 %v863
  %v1449 = vunpack.c.l.b16 %v864
  %v1450 = vunpack.c.l.b16 %v865
  %v1451 = vunpack.c.h.b16 %v865
  %v1452 = vunpack.c.l.b16 %v866
  %v1453 = vunpack.c.h.b16 %v866
  %v1454 = vunpack.c.l.b16 %v867
  %v1455 = vunpack.c.h.b16 %v867
  %v1456 = vunpack.c.l.b16 %v868
  %v1457 = vunpack.c.l.b16 %v869
  %v1458 = vunpack.c.h.b16 %v869
  %v1459 = vunpack.c.l.b16 %v870
  %v1460 = vunpack.c.h.b16 %v870
  %v1461 = vunpack.c.l.b16 %v871
  %v1462 = vunpack.c.h.b16 %v871
  %v1463 = vunpack.c.l.b16 %v872
  %v1464 = vunpack.c.l.b16 %v873
  %v1465 = vunpack.c.h.b16 %v873
  %v1466 = vunpack.c.l.b16 %v874
  %v1467 = vunpack.c.h.b16 %v874
  %v1468 = vunpack.c.l.b16 %v875
  %v1469 = vunpack.c.h.b16 %v875
  %v1470 = vunpack.c.l.b16 %v876
  %v1471 = vunpack.c.l.b16 %v877
  %v1472 = vunpack.c.h.b16 %v877
  %v1473 = vunpack.c.l.b16 %v878
  %v1474 = vunpack.c.h.b16 %v878
  %v1475 = vunpack.c.l.b16 %v879
  %v1476 = vunpack.c.h.b16 %v879
  %v1477 = vunpack.c.l.b16 %v880
  %v1478 = vunpack.c.l.b16 %v881
  %v1479 = vunpack.c.h.b16 %v881
  %v1480 = vunpack.c.l.b16 %v882
  %v1481 = vunpack.c.h.b16 %v882
  %v1482 = vunpack.c.l.b16 %v883
  %v1483 = vunpack.c.h.b16 %v883
  %v1484 = vunpack.c.l.b16 %v884
  %v1485 = vunpack.c.l.b16 %v885
  %v1486 = vunpack.c.h.b16 %v885
  %v1487 = vunpack.c.l.b16 %v886
  %v1488 = vunpack.c.h.b16 %v886
  %v1489 = vunpack.c.l.b16 %v887
  %v1490 = vunpack.c.h.b16 %v887
  %v1491 = vunpack.c.l.b16 %v888
  %v1492 = vunpack.c.l.b16 %v889
  %v1493 = vunpack.c.h.b16 %v889
  %v1494 = vunpack.c.l.b16 %v890
  %v1495 = vunpack.c.h.b16 %v890
  %v1496 = vunpack.c.l.b16 %v891
  %v1497 = vunpack.c.h.b16 %v891
  %v1498 = vunpack.c.l.b16 %v892
  %v1499 = vunpack.c.l.b16 %v893
  %v1500 = vunpack.c.h.b16 %v893
  %v1501 = vunpack.c.l.b16 %v894
  %v1502 = vunpack.c.h.b16 %v894
  %v1503 = vunpack.c.l.b16 %v895
  %v1504 = vunpack.c.h.b16 %v895
  %v1505 = vunpack.c.l.b16 %v896
  %v1506 = vunpack.c.l.b16 %v897
  %v1507 = vunpack.c.h.b16 %v897
  %v1508 = vunpack.c.l.b16 %v898
  %v1509 = vunpack.c.h.b16 %v898
  %v1510 = vunpack.c.l.b16 %v899
  %v1511 = vunpack.c.h.b16 %v899
  %v1512 = vunpack.c.l.b16 %v900
  %v1513 = vunpack.c.l.b16 %v901
  %v1514 = vunpack.c.h.b16 %v901
  %v1515 = vunpack.c.l.b16 %v902
  %v1516 = vunpack.c.h.b16 %v902
  %v1517 = vunpack.c.l.b16 %v903
  %v1518 = vunpack.c.h.b16 %v903
  %v1519 = vunpack.c.l.b16 %v904
  %v1520 = vunpack.c.l.b16 %v905
  %v1521 = vunpack.c.h.b16 %v905
  %v1522 = vunpack.c.l.b16 %v906
  %v1523 = vunpack.c.h.b16 %v906
  %v1524 = vunpack.c.l.b16 %v907
  %v1525 = vunpack.c.h.b16 %v907
  %v1526 = vunpack.c.l.b16 %v908
  %v1527 = vunpack.c.l.b16 %v909
  %v1528 = vunpack.c.h.b16 %v909
  %v1529 = vunpack.c.l.b16 %v910
  %v1530 = vunpack.c.h.b16 %v910
  %v1531 = vunpack.c.l.b16 %v911
  %v1532 = vunpack.c.h.b16 %v911
  %v1533 = vunpack.c.l.b16 %v912
  %v1534 = vunpack.c.l.b16 %v913
  %v1535 = vunpack.c.h.b16 %v913
  %v1536 = vunpack.c.l.b16 %v914
  %v1537 = vunpack.c.h.b16 %v914
  %v1538 = vunpack.c.l.b16 %v915
  %v1539 = vunpack.c.h.b16 %v915
  %v1540 = vunpack.c.l.b16 %v916
  %v1541 = vunpack.c.l.b16 %v917
  %v1542 = vunpack.c.h.b16 %v917
  %v1543 = vunpack.c.l.b16 %v918
  %v1544 = vunpack.c.h.b16 %v918
  %v1545 = vunpack.c.l.b16 %v919
  %v1546 = vunpack.c.h.b16 %v919
  %v1547 = vunpack.c.l.b16 %v920
  %v1548 = vunpack.c.l.b16 %v921
  %v1549 = vunpack.c.h.b16 %v921
  %v1550 = vunpack.c.l.b16 %v922
  %v1551 = vunpack.c.h.b16 %v922
  %v1552 = vunpack.c.l.b16 %v923
  %v1553 = vunpack.c.h.b16 %v923
  %v1554 = vunpack.c.l.b16 %v924
  %v1555 = vunpack.c.l.b16 %v925
  %v1556 = vunpack.c.h.b16 %v925
  %v1557 = vunpack.c.l.b16 %v926
  %v1558 = vunpack.c.h.b16 %v926
  %v1559 = vunpack.c.l.b16 %v927
  %v1560 = vunpack.c.h.b16 %v927
  %v1561 = vunpack.c.l.b16 %v928
  %v1562 = vunpack.c.l.b16 %v929
  %v1563 = vunpack.c.h.b16 %v929
  %v1564 = vunpack.c.l.b16 %v930
  %v1565 = vunpack.c.h.b16 %v930
  %v1566 = vunpack.c.l.b16 %v931
  %v1567 = vunpack.c.h.b16 %v931
  %v1568 = vunpack.c.l.b16 %v932
  %v1569 = vunpack.c.l.b16 %v933
  %v1570 = vunpack.c.h.b16 %v933
  %v1571 = vunpack.c.l.b16 %v934
  %v1572 = vunpack.c.h.b16 %v934
  %v1573 = vunpack.c.l.b16 %v935
  %v1574 = vunpack.c.h.b16 %v935
  %v1575 = vunpack.c.l.b16 %v936
  %v1576 = vunpack.c.l.b16 %v937
  %v1577 = vunpack.c.h.b16 %v937
  %v1578 = vunpack.c.l.b16 %v938
  %v1579 = vunpack.c.h.b16 %v938
  %v1580 = vunpack.c.l.b16 %v939
  %v1581 = vunpack.c.h.b16 %v939
  %v1582 = vunpack.c.l.b16 %v940
  %v1583 = vunpack.c.l.b16 %v941
  %v1584 = vunpack.c.h.b16 %v941
  %v1585 = vunpack.c.l.b16 %v942
  %v1586 = vunpack.c.h.b16 %v942
  %v1587 = vunpack.c.l.b16 %v943
  %v1588 = vunpack.c.h.b16 %v943
  %v1589 = vunpack.c.l.b16 %v944
  %v1590 = vunpack.c.l.b16 %v945
  %v1591 = vunpack.c.h.b16 %v945
  %v1592 = vunpack.c.l.b16 %v946
  %v1593 = vunpack.c.h.b16 %v946
  %v1594 = vunpack.c.l.b16 %v947
  %v1595 = vunpack.c.h.b16 %v947
  %v1596 = vunpack.c.l.b16 %v948
  %v1597 = vunpack.c.l.b16 %v949
  %v1598 = vunpack.c.h.b16 %v949
  %v1599 = vunpack.c.l.b16 %v950
  %v1600 = vunpack.c.h.b16 %v950
  %v1601 = vunpack.c.l.b16 %v951
  %v1602 = vunpack.c.h.b16 %v951
  %v1603 = vunpack.c.l.b16 %v952
  %v1604 = vunpack.c.l.b16 %v953
  %v1605 = vunpack.c.h.b16 %v953
  %v1606 = vunpack.c.l.b16 %v954
  %v1607 = vunpack.c.h.b16 %v954
  %v1608 = vunpack.c.l.b16 %v955
  %v1609 = vunpack.c.h.b16 %v955
  %v1610 = vunpack.c.l.b16 %v956
  %v1611 = vunpack.c.l.b16 %v957
  %v1612 = vunpack.c.h.b16 %v957
  %v1613 = vunpack.c.l.b16 %v958
  %v1614 = vunpack.c.h.b16 %v958
  %v1615 = vunpack.c.l.b16 %v959
  %v1616 = vunpack.c.h.b16 %v959
  %v1617 = vunpack.c.l.b16 %v960
  %v1618 = vunpack.c.l.b16 %v961
  %v1619 = vunpack.c.h.b16 %v961
  %v1620 = vunpack.c.l.b16 %v962
  %v1621 = vunpack.c.h.b16 %v962
  %v1622 = vunpack.c.l.b16 %v963
  %v1623 = vunpack.c.h.b16 %v963
  %v1624 = vunpack.c.l.b16 %v964
  %v1625 = vunpack.c.l.b16 %v965
  %v1626 = vunpack.c.h.b16 %v965
  %v1627 = vunpack.c.l.b16 %v966
  %v1628 = vunpack.c.h.b16 %v966
  %v1629 = vunpack.c.l.b16 %v967
  %v1630 = vunpack.c.h.b16 %v967
  %v1631 = vunpack.c.l.b16 %v968
  %v1632 = vunpack.c.l.b16 %v969
  %v1633 = vunpack.c.h.b16 %v969
  %v1634 = vunpack.c.l.b16 %v970
  %v1635 = vunpack.c.h.b16 %v970
  %v1636 = vunpack.c.l.b16 %v971
  %v1637 = vunpack.c.h.b16 %v971
  %v1638 = vunpack.c.l.b16 %v972
  %v1639 = vunpack.c.l.b16 %v973
  %v1640 = vunpack.c.h.b16 %v973
  %v1641 = vunpack.c.l.b16 %v974
  %v1642 = vunpack.c.h.b16 %v974
  %v1643 = vunpack.c.l.b16 %v975
  %v1644 = vunpack.c.h.b16 %v975
  %v1645 = vunpack.c.l.b16 %v976
  %v1646 = vunpack.c.l.b16 %v977
  %v1647 = vunpack.c.h.b16 %v977
  %v1648 = vunpack.c.l.b16 %v978
  %v1649 = vunpack.c.h.b16 %v978
  %v1650 = vunpack.c.l.b16 %v979
  %v1651 = vunpack.c.h.b16 %v979
  %v1652 = vunpack.c.l.b16 %v980
  %v1653 = vunpack.c.l.b16 %v981
  %v1654 = vunpack.c.h.b16 %v981
  %v1655 = vunpack.c.l.b16 %v982
  %v1656 = vunpack.c.h.b16 %v982
  %v1657 = vunpack.c.l.b16 %v983
  %v1658 = vunpack.c.h.b16 %v983
  %v1659 = vunpack.c.l.b16 %v984
  %v1660 = vunpack.c.l.b16 %v985
  %v1661 = vunpack.c.h.b16 %v985
  %v1662 = vunpack.c.l.b16 %v986
  %v1663 = vunpack.c.h.b16 %v986
  %v1664 = vunpack.c.l.b16 %v987
  %v1665 = vunpack.c.h.b16 %v987
  %v1666 = vunpack.c.l.b16 %v988
  %v1667 = vunpack.c.l.b16 %v989
  %v1668 = vunpack.c.h.b16 %v989
  %v1669 = vunpack.c.l.b16 %v990
  %v1670 = vunpack.c.h.b16 %v990
  %v1671 = vunpack.c.l.b16 %v991
  %v1672 = vunpack.c.h.b16 %v991
  %v1673 = vunpack.c.l.b16 %v992
  %v1674 = vunpack.c.l.b16 %v993
  %v1675 = vunpack.c.h.b16 %v993
  %v1676 = vunpack.c.l.b16 %v994
  %v1677 = vunpack.c.h.b16 %v994
  %v1678 = vunpack.c.l.b16 %v995
  %v1679 = vunpack.c.h.b16 %v995
  %v1680 = vunpack.c.l.b16 %v996
  %v1681 = vunpack.c.l.b16 %v997
  %v1682 = vunpack.c.h.b16 %v997
  %v1683 = vunpack.c.l.b16 %v998
  %v1684 = vunpack.c.h.b16 %v998
  %v1685 = vunpack.c.l.b16 %v999
  %v1686 = vunpack.c.h.b16 %v999
  %v1687 = vunpack.c.l.b16 %v1000
  %v1688 = vunpack.c.l.b16 %v1001
  %v1689 = vunpack.c.h.b16 %v1001
  %v1690 = vunpack.c.l.b16 %v1002
  %v1691 = vunpack.c.h.b16 %v1002
  %v1692 = vunpack.c.l.b16 %v1003
  %v1693 = vunpack.c.h.b16 %v1003
  %v1694 = vunpack.c.l.b16 %v1004
  %v1695 = vunpack.c.l.b16 %v1005
  %v1696 = vunpack.c.h.b16 %v1005
  %v1697 = vunpack.c.l.b16 %v1006
  %v1698 = vunpack.c.h.b16 %v1006
  %v1699 = vunpack.c.l.b16 %v1007
  %v1700 = vunpack.c.h.b16 %v1007
  %v1701 = vunpack.c.l.b16 %v1008
  %v1702 = vunpack.c.l.b16 %v1009
  %v1703 = vunpack.c.h.b16 %v1009
  %v1704 = vunpack.c.l.b16 %v1010
  %v1705 = vunpack.c.h.b16 %v1010
  %v1706 = vunpack.c.l.b16 %v1011
  %v1707 = vunpack.c.h.b16 %v1011
  %v1708 = vunpack.c.l.b16 %v1012
  %v1709 = vunpack.c.l.b16 %v1013
  %v1710 = vunpack.c.h.b16 %v1013
  %v1711 = vunpack.c.l.b16 %v1014
  %v1712 = vunpack.c.h.b16 %v1014
  %v1713 = vunpack.c.l.b16 %v1015
  %v1714 = vunpack.c.h.b16 %v1015
  %v1715 = vunpack.c.l.b16 %v1016
  %v1716 = vunpack.c.l.b16 %v1017
  %v1717 = vunpack.c.h.b16 %v1017
  %v1718 = vunpack.c.l.b16 %v1018
  %v1719 = vunpack.c.h.b16 %v1018
  %v1720 = vunpack.c.l.b16 %v1019
  %v1721 = vunpack.c.h.b16 %v1019
  %v1722 = vunpack.c.l.b16 %v1020
  %v1723 = vunpack.c.l.b16 %v1021
  %v1724 = vunpack.c.h.b16 %v1021
  %v1725 = vunpack.c.l.b16 %v1022
  %v1726 = vunpack.c.h.b16 %v1022
  %v1727 = vunpack.c.l.b16 %v1023
  %v1728 = vunpack.c.h.b16 %v1023
  %v1729 = vunpack.c.l.b16 %v1024
  %v1730 = vunpack.c.l.b16 %v1025
  %v1731 = vunpack.c.h.b16 %v1025
  %v1732 = vunpack.c.l.b16 %v1026
  %v1733 = vunpack.c.h.b16 %v1026
  %v1734 = vunpack.c.l.b16 %v1027
  %v1735 = vunpack.c.h.b16 %v1027
  %v1736 = vunpack.c.l.b16 %v1028
  %v1737 = vunpack.c.l.b16 %v1029
  %v1738 = vunpack.c.h.b16 %v1029
  %v1739 = vunpack.c.l.b16 %v1030
  %v1740 = vunpack.c.h.b16 %v1030
  %v1741 = vunpack.c.l.b16 %v1031
  %v1742 = vunpack.c.h.b16 %v1031
  %v1743 = vunpack.c.l.b16 %v1032
  %v1744 = vunpack.c.l.b16 %v1033
  %v1745 = vunpack.c.h.b16 %v1033
  %v1746 = vunpack.c.l.b16 %v1034
  %v1747 = vunpack.c.h.b16 %v1034
  %v1748 = vunpack.c.l.b16 %v1035
  %v1749 = vunpack.c.h.b16 %v1035
  %v1750 = vunpack.c.l.b16 %v1036
  %v1751 = vunpack.c.l.b16 %v1037
  %v1752 = vunpack.c.h.b16 %v1037
  %v1753 = vunpack.c.l.b16 %v1038
  %v1754 = vunpack.c.h.b16 %v1038
  %v1755 = vunpack.c.l.b16 %v1039
  %v1756 = vunpack.c.h.b16 %v1039
  %v1757 = vunpack.c.l.b16 %v1040
  %v1758 = vunpack.c.l.b16 %v1041
  %v1759 = vunpack.c.h.b16 %v1041
  %v1760 = vunpack.c.l.b16 %v1042
  %v1761 = vunpack.c.h.b16 %v1042
  %v1762 = vunpack.c.l.b16 %v1043
  %v1763 = vunpack.c.h.b16 %v1043
  %v1764 = vunpack.c.l.b16 %v1044
  %v1765 = vunpack.c.l.b16 %v1045
  %v1766 = vunpack.c.h.b16 %v1045
  %v1767 = vunpack.c.l.b16 %v1046
  %v1768 = vunpack.c.h.b16 %v1046
  %v1769 = vunpack.c.l.b16 %v1047
  %v1770 = vunpack.c.h.b16 %v1047
  %v1771 = vunpack.c.l.b16 %v1048
  %v1772 = vunpack.c.l.b16 %v1049
  %v1773 = vunpack.c.h.b16 %v1049
  %v1774 = vunpack.c.l.b16 %v1050
  %v1775 = vunpack.c.h.b16 %v1050
  %v1776 = vunpack.c.l.b16 %v1051
  %v1777 = vunpack.c.h.b16 %v1051
  %v1778 = vunpack.c.l.b16 %v1052
  %v1779 = vunpack.c.l.b16 %v1053
  %v1780 = vunpack.c.h.b16 %v1053
  %v1781 = vunpack.c.l.b16 %v1054
  %v1782 = vunpack.c.h.b16 %v1054
  %v1783 = vunpack.c.l.b16 %v1055
  %v1784 = vunpack.c.h.b16 %v1055
  %v1785 = vunpack.c.l.b16 %v1056
  %v1786 = vunpack.c.l.b16 %v1057
  %v1787 = vunpack.c.h.b16 %v1057
  %v1788 = vunpack.c.l.b16 %v1058
  %v1789 = vunpack.c.h.b16 %v1058
  %v1790 = vunpack.c.l.b16 %v1059
  %v1791 = vunpack.c.h.b16 %v1059
  %v1792 = vunpack.c.l.b16 %v1060
  %v1793 = vunpack.c.l.b16 %v1061
  %v1794 = vunpack.c.h.b16 %v1061
  %v1795 = vunpack.c.l.b16 %v1062
  %v1796 = vunpack.c.h.b16 %v1062
  %v1797 = vunpack.c.l.b16 %v1063
  %v1798 = vunpack.c.h.b16 %v1063
  %v1799 = vunpack.c.l.b16 %v1064
  %v1800 = vunpack.c.l.b16 %v1065
  %v1801 = vunpack.c.h.b16 %v1065
  %v1802 = vunpack.c.l.b16 %v1066
  %v1803 = vunpack.c.h.b16 %v1066
  %v1804 = vunpack.c.l.b16 %v1067
  %v1805 = vunpack.c.h.b16 %v1067
  %v1806 = vunpack.c.l.b16 %v1068
  %v1807 = vunpack.c.l.b16 %v1069
  %v1808 = vunpack.c.h.b16 %v1069
  %v1809 = vunpack.c.l.b16 %v1070
  %v1810 = vunpack.c.h.b16 %v1070
  %v1811 = vunpack.c.l.b16 %v1071
  %v1812 = vunpack.c.h.b16 %v1071
  %v1813 = vunpack.c.l.b16 %v1072
  %v1814 = vpack.c.b16 %v1373, %v1366
  %v1815 = vpack.c.b16 %v1374, %v1367
  %v1816 = vpack.c.b16 %v1375, %v1368
  %v1817 = vpack.c.b16 %v1376, %v1369
  %v1818 = vpack.c.b16 %v1377, %v1370
  %v1819 = vpack.c.b16 %v1378, %v1371
  %v1820 = vpack.c.b16 %v1379, %v1372
  %v1821 = vpack.c.b16 %v1387, %v1380
  %v1822 = vpack.c.b16 %v1388, %v1381
  %v1823 = vpack.c.b16 %v1389, %v1382
  %v1824 = vpack.c.b16 %v1390, %v1383
  %v1825 = vpack.c.b16 %v1391, %v1384
  %v1826 = vpack.c.b16 %v1392, %v1385
  %v1827 = vpack.c.b16 %v1393, %v1386
  %v1828 = vpack.c.b16 %v1401, %v1394
  %v1829 = vpack.c.b16 %v1402, %v1395
  %v1830 = vpack.c.b16 %v1403, %v1396
  %v1831 = vpack.c.b16 %v1404, %v1397
  %v1832 = vpack.c.b16 %v1405, %v1398
  %v1833 = vpack.c.b16 %v1406, %v1399
  %v1834 = vpack.c.b16 %v1407, %v1400
  %v1835 = vpack.c.b16 %v1415, %v1408
  %v1836 = vpack.c.b16 %v1416, %v1409
  %v1837 = vpack.c.b16 %v1417, %v1410
  %v1838 = vpack.c.b16 %v1418, %v1411
  %v1839 = vpack.c.b16 %v1419, %v1412
  %v1840 = vpack.c.b16 %v1420, %v1413
  %v1841 = vpack.c.b16 %v1421, %v1414
  %v1842 = vpack.c.b16 %v1429, %v1422
  %v1843 = vpack.c.b16 %v1430, %v1423
  %v1844 = vpack.c.b16 %v1431, %v1424
  %v1845 = vpack.c.b16 %v1432, %v1425
  %v1846 = vpack.c.b16 %v1433, %v1426
  %v1847 = vpack.c.b16 %v1434, %v1427
  %v1848 = vpack.c.b16 %v1435, %v1428
  %v1849 = vpack.c.b16 %v1443, %v1436
  %v1850 = vpack.c.b16 %v1444, %v1437
  %v1851 = vpack.c.b16 %v1445, %v1438
  %v1852 = vpack.c.b16 %v1446, %v1439
  %v1853 = vpack.c.b16 %v1447, %v1440
  %v1854 = vpack.c.b16 %v1448, %v1441
  %v1855 = vpack.c.b16 %v1449, %v1442
  %v1856 = vpack.c.b16 %v1457, %v1450
  %v1857 = vpack.c.b16 %v1458, %v1451
  %v1858 = vpack.c.b16 %v1459, %v1452
  %v1859 = vpack.c.b16 %v1460, %v1453
  %v1860 = vpack.c.b16 %v1461, %v1454
  %v1861 = vpack.c.b16 %v1462, %v1455
  %v1862 = vpack.c.b16 %v1463, %v1456
  %v1863 = vpack.c.b16 %v1471, %v1464
  %v1864 = vpack.c.b16 %v1472, %v1465
  %v1865 = vpack.c.b16 %v1473, %v1466
  %v1866 = vpack.c.b16 %v1474, %v1467
  %v1867 = vpack.c.b16 %v1475, %v1468
  %v1868 = vpack.c.b16 %v1476, %v1469
  %v1869 = vpack.c.b16 %v1477, %v1470
  %v1870 = vpack.c.b16 %v1485, %v1478
  %v1871 = vpack.c.b16 %v1486, %v1479
  %v1872 = vpack.c.b16 %v1487, %v1480
  %v1873 = vpack.c.b16 %v1488, %v1481
  %v1874 = vpack.c.b16 %v1489, %v1482
  %v1875 = vpack.c.b16 %v1490, %v1483
  %v1876 = vpack.c.b16 %v1491, %v1484
  %v1877 = vpack.c.b16 %v1499, %v1492
  %v1878 = vpack.c.b16 %v1500, %v1493
  %v1879 = vpack.c.b16 %v1501, %v1494
  %v1880 = vpack.c.b16 %v1502, %v1495
  %v1881 = vpack.c.b16 %v1503, %v1496
  %v1882 = vpack.c.b16 %v1504, %v1497
  %v1883 = vpack.c.b16 %v1505, %v1498
  %v1884 = vpack.c.b16 %v1513, %v1506
  %v1885 = vpack.c.b16 %v1514, %v1507
  %v1886 = vpack.c.b16 %v1515, %v1508
  %v1887 = vpack.c.b16 %v1516, %v1509
  %v1888 = vpack.c.b16 %v1517, %v1510
  %v1889 = vpack.c.b16 %v1518, %v1511
  %v1890 = vpack.c.b16 %v1519, %v1512
  %v1891 = vpack.c.b16 %v1527, %v1520
  %v1892 = vpack.c.b16 %v1528, %v1521
  %v1893 = vpack.c.b16 %v1529, %v1522
  %v1894 = vpack.c.b16 %v1530, %v1523
  %v1895 = vpack.c.b16 %v1531, %v1524
  %v1896 = vpack.c.b16 %v1532, %v1525
  %v1897 = vpack.c.b16 %v1533, %v1526
  %v1898 = vpack.c.b16 %v1541, %v1534
  %v1899 = vpack.c.b16 %v1542, %v1535
  %v1900 = vpack.c.b16 %v1543, %v1536
  %v1901 = vpack.c.b16 %v1544, %v1537
  %v1902 = vpack.c.b16 %v1545, %v1538
  %v1903 = vpack.c.b16 %v1546, %v1539
  %v1904 = vpack.c.b16 %v1547, %v1540
  %v1905 = vpack.c.b16 %v1555, %v1548
  %v1906 = vpack.c.b16 %v1556, %v1549
  %v1907 = vpack.c.b16 %v1557, %v1550
  %v1908 = vpack.c.b16 %v1558, %v1551
  %v1909 = vpack.c.b16 %v1559, %v1552
  %v1910 = vpack.c.b16 %v1560, %v1553
  %v1911 = vpack.c.b16 %v1561, %v1554
  %v1912 = vpack.c.b16 %v1569, %v1562
  %v1913 = vpack.c.b16 %v1570, %v1563
  %v1914 = vpack.c.b16 %v1571, %v1564
  %v1915 = vpack.c.b16 %v1572, %v1565
  %v1916 = vpack.c.b16 %v1573, %v1566
  %v1917 = vpack.c.b16 %v1574, %v1567
  %v1918 = vpack.c.b16 %v1575, %v1568
  %v1919 = vpack.c.b16 %v1583, %v1576
  %v1920 = vpack.c.b16 %v1584, %v1577
  %v1921 = vpack.c.b16 %v1585, %v1578
  %v1922 = vpack.c.b16 %v1586, %v1579
  %v1923 = vpack.c.b16 %v1587, %v1580
  %v1924 = vpack.c.b16 %v1588, %v1581
  %v1925 = vpack.c.b16 %v1589, %v1582
  %v1926 = vpack.c.b16 %v1597, %v1590
  %v1927 = vpack.c.b16 %v1598, %v1591
  %v1928 = vpack.c.b16 %v1599, %v1592
  %v1929 = vpack.c.b16 %v1600, %v1593
  %v1930 = vpack.c.b16 %v1601, %v1594
  %v1931 = vpack.c.b16 %v1602, %v1595
  %v1932 = vpack.c.b16 %v1603, %v1596
  %v1933 = vpack.c.b16 %v1611, %v1604
  %v1934 = vpack.c.b16 %v1612, %v1605
  %v1935 = vpack.c.b16 %v1613, %v1606
  %v1936 = vpack.c.b16 %v1614, %v1607
  %v1937 = vpack.c.b16 %v1615, %v1608
  %v1938 = vpack.c.b16 %v1616, %v1609
  %v1939 = vpack.c.b16 %v1617, %v1610
  %v1940 = vpack.c.b16 %v1625, %v1618
  %v1941 = vpack.c.b16 %v1626, %v1619
  %v1942 = vpack.c.b16 %v1627, %v1620
  %v1943 = vpack.c.b16 %v1628, %v1621
  %v1944 = vpack.c.b16 %v1629, %v1622
  %v1945 = vpack.c.b16 %v1630, %v1623
  %v1946 = vpack.c.b16 %v1631, %v1624
  %v1947 = vpack.c.b16 %v1639, %v1632
  %v1948 = vpack.c.b16 %v1640, %v1633
  %v1949 = vpack.c.b16 %v1641, %v1634
  %v1950 = vpack.c.b16 %v1642, %v1635
  %v1951 = vpack.c.b16 %v1643, %v1636
  %v1952 = vpack.c.b16 %v1644, %v1637
  %v1953 = vpack.c.b16 %v1645, %v1638
  %v1954 = vpack.c.b16 %v1653, %v1646
  %v1955 = vpack.c.b16 %v1654, %v1647
  %v1956 = vpack.c.b16 %v1655, %v1648
  %v1957 = vpack.c.b16 %v1656, %v1649
  %v1958 = vpack.c.b16 %v1657, %v1650
  %v1959 = vpack.c.b16 %v1658, %v1651
  %v1960 = vpack.c.b16 %v1659, %v1652
  %v1961 = vpack.c.b16 %v1667, %v1660
  %v1962 = vpack.c.b16 %v1668, %v1661
  %v1963 = vpack.c.b16 %v1669, %v1662
  %v1964 = vpack.c.b16 %v1670, %v1663
  %v1965 = vpack.c.b16 %v1671, %v1664
  %v1966 = vpack.c.b16 %v1672, %v1665
  %v1967 = vpack.c.b16 %v1673, %v1666
  %v1968 = vpack.c.b16 %v1681, %v1674
  %v1969 = vpack.c.b16 %v1682, %v1675
  %v1970 = vpack.c.b16 %v1683, %v1676
  %v1971 = vpack.c.b16 %v1684, %v1677
  %v1972 = vpack.c.b16 %v1685, %v1678
  %v1973 = vpack.c.b16 %v1686, %v1679
  %v1974 = vpack.c.b16 %v1687, %v1680
  %v1975 = vpack.c.b16 %v1695, %v1688
  %v1976 = vpack.c.b16 %v1696, %v1689
  %v1977 = vpack.c.b16 %v1697, %v1690
  %v1978 = vpack.c.b16 %v1698, %v1691
  %v1979 = vpack.c.b16 %v1699, %v1692
  %v1980 = vpack.c.b16 %v1700, %v1693
  %v1981 = vpack.c.b16 %v1701, %v1694
  %v1982 = vpack.c.b16 %v1709, %v1702
  %v1983 = vpack.c.b16 %v1710, %v1703
  %v1984 = vpack.c.b16 %v1711, %v1704
  %v1985 = vpack.c.b16 %v1712, %v1705
  %v1986 = vpack.c.b16 %v1713, %v1706
  %v1987 = vpack.c.b16 %v1714, %v1707
  %v1988 = vpack.c.b16 %v1715, %v1708
  %v1989 = vpack.c.b16 %v1723, %v1716
  %v1990 = vpack.c.b16 %v1724, %v1717
  %v1991 = vpack.c.b16 %v1725, %v1718
  %v1992 = vpack.c.b16 %v1726, %v1719
  %v1993 = vpack.c.b16 %v1727, %v1720
  %v1994 = vpack.c.b16 %v1728, %v1721
  %v1995 = vpack.c.b16 %v1729, %v1722
  %v1996 = vpack.c.b16 %v1737, %v1730
  %v1997 = vpack.c.b16 %v1738, %v1731
  %v1998 = vpack.c.b16 %v1739, %v1732
  %v1999 = vpack.c.b16 %v1740, %v1733
  %v2000 = vpack.c.b16 %v1741, %v1734
  %v2001 = vpack.c.b16 %v1742, %v1735
  %v2002 = vpack.c.b16 %v1743, %v1736
  %v2003 = vpack.c.b16 %v1751, %v1744
  %v2004 = vpack.c.b16 %v1752, %v1745
  %v2005 = vpack.c.b16 %v1753, %v1746
  %v2006 = vpack.c.b16 %v1754, %v1747
  %v2007 = vpack.c.b16 %v1755, %v1748
  %v2008 = vpack.c.b16 %v1756, %v1749
  %v2009 = vpack.c.b16 %v1757, %v1750
  %v2010 = vpack.c.b16 %v1765, %v1758
  %v2011 = vpack.c.b16 %v1766, %v1759
  %v2012 = vpack.c.b16 %v1767, %v1760
  %v2013 = vpack.c.b16 %v1768, %v1761
  %v2014 = vpack.c.b16 %v1769, %v1762
  %v2015 = vpack.c.b16 %v1770, %v1763
  %v2016 = vpack.c.b16 %v1771, %v1764
  %v2017 = vpack.c.b16 %v1779, %v1772
  %v2018 = vpack.c.b16 %v1780, %v1773
  %v2019 = vpack.c.b16 %v1781, %v1774
  %v2020 = vpack.c.b16 %v1782, %v1775
  %v2021 = vpack.c.b16 %v1783, %v1776
  %v2022 = vpack.c.b16 %v1784, %v1777
  %v2023 = vpack.c.b16 %v1785, %v1778
  %v2024 = vpack.c.b16 %v1793, %v1786
  %v2025 = vpack.c.b16 %v1794, %v1787
  %v2026 = vpack.c.b16 %v1795, %v1788
  %v2027 = vpack.c.b16 %v1796, %v1789
  %v2028 = vpack.c.b16 %v1797, %v1790
  %v2029 = vpack.c.b16 %v1798, %v1791
  %v2030 = vpack.c.b16 %v1799, %v1792
  %v2031 = vpack.c.b16 %v1807, %v1800
  %v2032 = vpack.c.b16 %v1808, %v1801
  %v2033 = vpack.c.b16 %v1809, %v1802
  %v2034 = vpack.c.b16 %v1810, %v1803
  %v2035 = vpack.c.b16 %v1811, %v1804
  %v2036 = vpack.c.b16 %v1812, %v1805
  %v2037 = vpack.c.b16 %v1813, %v1806
  %2262 = vmatprep.subr.bf16.mxu0 %v1864
  %2263 = vmatpush1.bf16.msra.mxu0 %v1863
  %2264 = vmatprep.subr.bf16.mxu0 %v1857
  %2265 = vmatpush1.bf16.msra.mxu0 %v1856
  %2266 = vmatprep.subr.bf16.mxu0 %v1850
  %2267 = vmatpush1.bf16.msra.mxu0 %v1849
  %2268 = vmatprep.subr.bf16.mxu0 %v1843
  %2269 = vmatpush1.bf16.msra.mxu0 %v1842
  %2270 = vmatprep.subr.bf16.mxu0 %v1836
  %2271 = vmatpush1.bf16.msra.mxu0 %v1835
  %2272 = vmatprep.subr.bf16.mxu0 %v1829
  %2273 = vmatpush1.bf16.msra.mxu0 %v1828
  %2274 = vmatprep.subr.bf16.mxu0 %v1822
  %2275 = vmatpush1.bf16.msra.mxu0 %v1821
  %2276 = vmatprep.subr.bf16.mxu0 %v1815
  %2277 = vmatpush1.bf16.msra.mxu0 %v1814
  %2278 = vmatprep.subr.bf16.mxu0 %v1920
  %2279 = vmatpush2.bf16.msra.mxu0 %v1919
  %2280 = vmatprep.subr.bf16.mxu0 %v1913
  %2281 = vmatpush2.bf16.msra.mxu0 %v1912
  %2282 = vmatprep.subr.bf16.mxu0 %v1906
  %2283 = vmatpush2.bf16.msra.mxu0 %v1905
  %2284 = vmatprep.subr.bf16.mxu0 %v1899
  %2285 = vmatpush2.bf16.msra.mxu0 %v1898
  %2286 = vmatprep.subr.bf16.mxu0 %v1892
  %2287 = vmatpush2.bf16.msra.mxu0 %v1891
  %2288 = vmatprep.subr.bf16.mxu0 %v1885
  %2289 = vmatpush2.bf16.msra.mxu0 %v1884
  %2290 = vmatprep.subr.bf16.mxu0 %v1878
  %2291 = vmatpush2.bf16.msra.mxu0 %v1877
  %2292 = vmatprep.subr.bf16.mxu0 %v1871
  %2293 = vmatpush2.bf16.msra.mxu0 %v1870
  %2294 = vmatprep.mubr.bf16.mxu0 %v814
  %2295 = vmatmul.mubr.bf16.gmra.mxu0 %v813
  %v2296 = vpop.f32.mrf.mxu0
  %v2297 = vadd.f32 %v1078, %v2296
  %v2298 = vpop.f32.mrf.mxu0
  %v2299 = vadd.f32 %v1082, %v2298
  %v2300 = vpop.f32.mrf.mxu0
  %v2301 = vpop.f32.mrf.mxu0
  %2302 = vdwg.mxu0
  %2303 = vmatprep.subr.bf16.mxu0 %v1976
  %2304 = vmatpush1.bf16.msra.mxu0 %v1975
  %2305 = vmatprep.subr.bf16.mxu0 %v1969
  %2306 = vmatpush1.bf16.msra.mxu0 %v1968
  %2307 = vmatprep.subr.bf16.mxu0 %v1962
  %2308 = vmatpush1.bf16.msra.mxu0 %v1961
  %2309 = vmatprep.subr.bf16.mxu0 %v1955
  %2310 = vmatpush1.bf16.msra.mxu0 %v1954
  %2311 = vmatprep.subr.bf16.mxu0 %v1948
  %2312 = vmatpush1.bf16.msra.mxu0 %v1947
  %2313 = vmatprep.subr.bf16.mxu0 %v1941
  %2314 = vmatpush1.bf16.msra.mxu0 %v1940
  %2315 = vmatprep.subr.bf16.mxu0 %v1934
  %2316 = vmatpush1.bf16.msra.mxu0 %v1933
  %2317 = vmatprep.subr.bf16.mxu0 %v1927
  %2318 = vmatpush1.bf16.msra.mxu0 %v1926
  %2319 = vmatprep.subr.bf16.mxu0 %v2032
  %2320 = vmatpush2.bf16.msra.mxu0 %v2031
  %2321 = vmatprep.subr.bf16.mxu0 %v2025
  %2322 = vmatpush2.bf16.msra.mxu0 %v2024
  %2323 = vmatprep.subr.bf16.mxu0 %v2018
  %2324 = vmatpush2.bf16.msra.mxu0 %v2017
  %2325 = vmatprep.subr.bf16.mxu0 %v2011
  %2326 = vmatpush2.bf16.msra.mxu0 %v2010
  %2327 = vmatprep.subr.bf16.mxu0 %v2004
  %2328 = vmatpush2.bf16.msra.mxu0 %v2003
  %2329 = vmatprep.subr.bf16.mxu0 %v1997
  %2330 = vmatpush2.bf16.msra.mxu0 %v1996
  %2331 = vmatprep.subr.bf16.mxu0 %v1990
  %2332 = vmatpush2.bf16.msra.mxu0 %v1989
  %2333 = vmatprep.subr.bf16.mxu0 %v1983
  %2334 = vmatpush2.bf16.msra.mxu0 %v1982
  %2335 = vmatprep.mubr.bf16.mxu0 %v816
  %2336 = vmatmul.mubr.bf16.gmra.mxu0 %v815
  %v2337 = vpop.f32.mrf.mxu0
  %v2338 = vadd.f32 %v2297, %v2337
  %v2339 = vpop.f32.mrf.mxu0
  %v2340 = vadd.f32 %v2299, %v2339
  %v2341 = vpop.f32.mrf.mxu0
  %v2342 = vpop.f32.mrf.mxu0
  %2343 = vdwg.mxu0
  %2344 = vmatprep.subr.bf16.mxu0 %v1866
  %2345 = vmatpush1.bf16.msra.mxu0 %v1865
  %2346 = vmatprep.subr.bf16.mxu0 %v1859
  %2347 = vmatpush1.bf16.msra.mxu0 %v1858
  %2348 = vmatprep.subr.bf16.mxu0 %v1852
  %2349 = vmatpush1.bf16.msra.mxu0 %v1851
  %2350 = vmatprep.subr.bf16.mxu0 %v1845
  %2351 = vmatpush1.bf16.msra.mxu0 %v1844
  %2352 = vmatprep.subr.bf16.mxu0 %v1838
  %2353 = vmatpush1.bf16.msra.mxu0 %v1837
  %2354 = vmatprep.subr.bf16.mxu0 %v1831
  %2355 = vmatpush1.bf16.msra.mxu0 %v1830
  %2356 = vmatprep.subr.bf16.mxu0 %v1824
  %2357 = vmatpush1.bf16.msra.mxu0 %v1823
  %2358 = vmatprep.subr.bf16.mxu0 %v1817
  %2359 = vmatpush1.bf16.msra.mxu0 %v1816
  %2360 = vmatprep.subr.bf16.mxu0 %v1922
  %2361 = vmatpush2.bf16.msra.mxu0 %v1921
  %2362 = vmatprep.subr.bf16.mxu0 %v1915
  %2363 = vmatpush2.bf16.msra.mxu0 %v1914
  %2364 = vmatprep.subr.bf16.mxu0 %v1908
  %2365 = vmatpush2.bf16.msra.mxu0 %v1907
  %2366 = vmatprep.subr.bf16.mxu0 %v1901
  %2367 = vmatpush2.bf16.msra.mxu0 %v1900
  %2368 = vmatprep.subr.bf16.mxu0 %v1894
  %2369 = vmatpush2.bf16.msra.mxu0 %v1893
  %2370 = vmatprep.subr.bf16.mxu0 %v1887
  %2371 = vmatpush2.bf16.msra.mxu0 %v1886
  %2372 = vmatprep.subr.bf16.mxu0 %v1880
  %2373 = vmatpush2.bf16.msra.mxu0 %v1879
  %2374 = vmatprep.subr.bf16.mxu0 %v1873
  %2375 = vmatpush2.bf16.msra.mxu0 %v1872
  %2376 = vmatprep.mubr.bf16.mxu0 %v814
  %2377 = vmatmul.mubr.bf16.gmra.mxu0 %v813
  %v2378 = vpop.f32.mrf.mxu0
  %v2379 = vadd.f32 %v1086, %v2378
  %v2380 = vpop.f32.mrf.mxu0
  %v2381 = vadd.f32 %v1090, %v2380
  %v2382 = vpop.f32.mrf.mxu0
  %v2383 = vpop.f32.mrf.mxu0
  %2384 = vdwg.mxu0
  %2385 = vmatprep.subr.bf16.mxu0 %v1978
  %2386 = vmatpush1.bf16.msra.mxu0 %v1977
  %2387 = vmatprep.subr.bf16.mxu0 %v1971
  %2388 = vmatpush1.bf16.msra.mxu0 %v1970
  %2389 = vmatprep.subr.bf16.mxu0 %v1964
  %2390 = vmatpush1.bf16.msra.mxu0 %v1963
  %2391 = vmatprep.subr.bf16.mxu0 %v1957
  %2392 = vmatpush1.bf16.msra.mxu0 %v1956
  %2393 = vmatprep.subr.bf16.mxu0 %v1950
  %2394 = vmatpush1.bf16.msra.mxu0 %v1949
  %2395 = vmatprep.subr.bf16.mxu0 %v1943
  %2396 = vmatpush1.bf16.msra.mxu0 %v1942
  %2397 = vmatprep.subr.bf16.mxu0 %v1936
  %2398 = vmatpush1.bf16.msra.mxu0 %v1935
  %2399 = vmatprep.subr.bf16.mxu0 %v1929
  %2400 = vmatpush1.bf16.msra.mxu0 %v1928
  %2401 = vmatprep.subr.bf16.mxu0 %v2034
  %2402 = vmatpush2.bf16.msra.mxu0 %v2033
  %2403 = vmatprep.subr.bf16.mxu0 %v2027
  %2404 = vmatpush2.bf16.msra.mxu0 %v2026
  %2405 = vmatprep.subr.bf16.mxu0 %v2020
  %2406 = vmatpush2.bf16.msra.mxu0 %v2019
  %2407 = vmatprep.subr.bf16.mxu0 %v2013
  %2408 = vmatpush2.bf16.msra.mxu0 %v2012
  %2409 = vmatprep.subr.bf16.mxu0 %v2006
  %2410 = vmatpush2.bf16.msra.mxu0 %v2005
  %2411 = vmatprep.subr.bf16.mxu0 %v1999
  %2412 = vmatpush2.bf16.msra.mxu0 %v1998
  %2413 = vmatprep.subr.bf16.mxu0 %v1992
  %2414 = vmatpush2.bf16.msra.mxu0 %v1991
  %2415 = vmatprep.subr.bf16.mxu0 %v1985
  %2416 = vmatpush2.bf16.msra.mxu0 %v1984
  %2417 = vmatprep.mubr.bf16.mxu0 %v816
  %2418 = vmatmul.mubr.bf16.gmra.mxu0 %v815
  %v2419 = vpop.f32.mrf.mxu0
  %v2420 = vadd.f32 %v2379, %v2419
  %v2421 = vpop.f32.mrf.mxu0
  %v2422 = vadd.f32 %v2381, %v2421
  %v2423 = vpop.f32.mrf.mxu0
  %v2424 = vpop.f32.mrf.mxu0
  %2425 = vdwg.mxu0
  %2426 = vmatprep.subr.bf16.mxu0 %v1868
  %2427 = vmatpush1.bf16.msra.mxu0 %v1867
  %2428 = vmatprep.subr.bf16.mxu0 %v1861
  %2429 = vmatpush1.bf16.msra.mxu0 %v1860
  %2430 = vmatprep.subr.bf16.mxu0 %v1854
  %2431 = vmatpush1.bf16.msra.mxu0 %v1853
  %2432 = vmatprep.subr.bf16.mxu0 %v1847
  %2433 = vmatpush1.bf16.msra.mxu0 %v1846
  %2434 = vmatprep.subr.bf16.mxu0 %v1840
  %2435 = vmatpush1.bf16.msra.mxu0 %v1839
  %2436 = vmatprep.subr.bf16.mxu0 %v1833
  %2437 = vmatpush1.bf16.msra.mxu0 %v1832
  %2438 = vmatprep.subr.bf16.mxu0 %v1826
  %2439 = vmatpush1.bf16.msra.mxu0 %v1825
  %2440 = vmatprep.subr.bf16.mxu0 %v1819
  %2441 = vmatpush1.bf16.msra.mxu0 %v1818
  %2442 = vmatprep.subr.bf16.mxu0 %v1924
  %2443 = vmatpush2.bf16.msra.mxu0 %v1923
  %2444 = vmatprep.subr.bf16.mxu0 %v1917
  %2445 = vmatpush2.bf16.msra.mxu0 %v1916
  %2446 = vmatprep.subr.bf16.mxu0 %v1910
  %2447 = vmatpush2.bf16.msra.mxu0 %v1909
  %2448 = vmatprep.subr.bf16.mxu0 %v1903
  %2449 = vmatpush2.bf16.msra.mxu0 %v1902
  %2450 = vmatprep.subr.bf16.mxu0 %v1896
  %2451 = vmatpush2.bf16.msra.mxu0 %v1895
  %2452 = vmatprep.subr.bf16.mxu0 %v1889
  %2453 = vmatpush2.bf16.msra.mxu0 %v1888
  %2454 = vmatprep.subr.bf16.mxu0 %v1882
  %2455 = vmatpush2.bf16.msra.mxu0 %v1881
  %2456 = vmatprep.subr.bf16.mxu0 %v1875
  %2457 = vmatpush2.bf16.msra.mxu0 %v1874
  %2458 = vmatprep.mubr.bf16.mxu0 %v814
  %2459 = vmatmul.mubr.bf16.gmra.mxu0 %v813
  %v2460 = vpop.f32.mrf.mxu0
  %v2461 = vadd.f32 %v1094, %v2460
  %v2462 = vpop.f32.mrf.mxu0
  %v2463 = vadd.f32 %v1098, %v2462
  %v2464 = vpop.f32.mrf.mxu0
  %v2465 = vpop.f32.mrf.mxu0
  %2466 = vdwg.mxu0
  %2467 = vmatprep.subr.bf16.mxu0 %v1980
  %2468 = vmatpush1.bf16.msra.mxu0 %v1979
  %2469 = vmatprep.subr.bf16.mxu0 %v1973
  %2470 = vmatpush1.bf16.msra.mxu0 %v1972
  %2471 = vmatprep.subr.bf16.mxu0 %v1966
  %2472 = vmatpush1.bf16.msra.mxu0 %v1965
  %2473 = vmatprep.subr.bf16.mxu0 %v1959
  %2474 = vmatpush1.bf16.msra.mxu0 %v1958
  %2475 = vmatprep.subr.bf16.mxu0 %v1952
  %2476 = vmatpush1.bf16.msra.mxu0 %v1951
  %2477 = vmatprep.subr.bf16.mxu0 %v1945
  %2478 = vmatpush1.bf16.msra.mxu0 %v1944
  %2479 = vmatprep.subr.bf16.mxu0 %v1938
  %2480 = vmatpush1.bf16.msra.mxu0 %v1937
  %2481 = vmatprep.subr.bf16.mxu0 %v1931
  %2482 = vmatpush1.bf16.msra.mxu0 %v1930
  %2483 = vmatprep.subr.bf16.mxu0 %v2036
  %2484 = vmatpush2.bf16.msra.mxu0 %v2035
  %2485 = vmatprep.subr.bf16.mxu0 %v2029
  %2486 = vmatpush2.bf16.msra.mxu0 %v2028
  %2487 = vmatprep.subr.bf16.mxu0 %v2022
  %2488 = vmatpush2.bf16.msra.mxu0 %v2021
  %2489 = vmatprep.subr.bf16.mxu0 %v2015
  %2490 = vmatpush2.bf16.msra.mxu0 %v2014
  %2491 = vmatprep.subr.bf16.mxu0 %v2008
  %2492 = vmatpush2.bf16.msra.mxu0 %v2007
  %2493 = vmatprep.subr.bf16.mxu0 %v2001
  %2494 = vmatpush2.bf16.msra.mxu0 %v2000
  %2495 = vmatprep.subr.bf16.mxu0 %v1994
  %2496 = vmatpush2.bf16.msra.mxu0 %v1993
  %2497 = vmatprep.subr.bf16.mxu0 %v1987
  %2498 = vmatpush2.bf16.msra.mxu0 %v1986
  %2499 = vmatprep.mubr.bf16.mxu0 %v816
  %2500 = vmatmul.mubr.bf16.gmra.mxu0 %v815
  %v2501 = vpop.f32.mrf.mxu0
  %v2502 = vadd.f32 %v2461, %v2501
  %v2503 = vpop.f32.mrf.mxu0
  %v2504 = vadd.f32 %v2463, %v2503
  %v2505 = vpop.f32.mrf.mxu0
  %v2506 = vpop.f32.mrf.mxu0
  %2507 = vdwg.mxu0
  %2508 = vmatprep.subr.bf16.mxu0 0
  %2509 = vmatpush1.bf16.msra.mxu0 %v1869
  %2510 = vmatprep.subr.bf16.mxu0 0
  %2511 = vmatpush1.bf16.msra.mxu0 %v1862
  %2512 = vmatprep.subr.bf16.mxu0 0
  %2513 = vmatpush1.bf16.msra.mxu0 %v1855
  %2514 = vmatprep.subr.bf16.mxu0 0
  %2515 = vmatpush1.bf16.msra.mxu0 %v1848
  %2516 = vmatprep.subr.bf16.mxu0 0
  %2517 = vmatpush1.bf16.msra.mxu0 %v1841
  %2518 = vmatprep.subr.bf16.mxu0 0
  %2519 = vmatpush1.bf16.msra.mxu0 %v1834
  %2520 = vmatprep.subr.bf16.mxu0 0
  %2521 = vmatpush1.bf16.msra.mxu0 %v1827
  %2522 = vmatprep.subr.bf16.mxu0 0
  %2523 = vmatpush1.bf16.msra.mxu0 %v1820
  %2524 = vmatprep.subr.bf16.mxu0 0
  %2525 = vmatpush2.bf16.msra.mxu0 %v1925
  %2526 = vmatprep.subr.bf16.mxu0 0
  %2527 = vmatpush2.bf16.msra.mxu0 %v1918
  %2528 = vmatprep.subr.bf16.mxu0 0
  %2529 = vmatpush2.bf16.msra.mxu0 %v1911
  %2530 = vmatprep.subr.bf16.mxu0 0
  %2531 = vmatpush2.bf16.msra.mxu0 %v1904
  %2532 = vmatprep.subr.bf16.mxu0 0
  %2533 = vmatpush2.bf16.msra.mxu0 %v1897
  %2534 = vmatprep.subr.bf16.mxu0 0
  %2535 = vmatpush2.bf16.msra.mxu0 %v1890
  %2536 = vmatprep.subr.bf16.mxu0 0
  %2537 = vmatpush2.bf16.msra.mxu0 %v1883
  %2538 = vmatprep.subr.bf16.mxu0 0
  %2539 = vmatpush2.bf16.msra.mxu0 %v1876
  %2540 = vmatprep.mubr.bf16.mxu0 %v814
  %2541 = vmatmul.mubr.bf16.gmra.mxu0 %v813
  %v2542 = vpop.f32.mrf.mxu0
  %v2543 = vadd.f32 %v1102, %v2542
  %v2544 = vpop.f32.mrf.mxu0
  %v2545 = vpop.f32.mrf.mxu0
  %v2546 = vpop.f32.mrf.mxu0
  %2547 = vdwg.mxu0
  %2548 = vmatprep.subr.bf16.mxu0 0
  %2549 = vmatpush1.bf16.msra.mxu0 %v1981
  %2550 = vmatprep.subr.bf16.mxu0 0
  %2551 = vmatpush1.bf16.msra.mxu0 %v1974
  %2552 = vmatprep.subr.bf16.mxu0 0
  %2553 = vmatpush1.bf16.msra.mxu0 %v1967
  %2554 = vmatprep.subr.bf16.mxu0 0
  %2555 = vmatpush1.bf16.msra.mxu0 %v1960
  %2556 = vmatprep.subr.bf16.mxu0 0
  %2557 = vmatpush1.bf16.msra.mxu0 %v1953
  %2558 = vmatprep.subr.bf16.mxu0 0
  %2559 = vmatpush1.bf16.msra.mxu0 %v1946
  %2560 = vmatprep.subr.bf16.mxu0 0
  %2561 = vmatpush1.bf16.msra.mxu0 %v1939
  %2562 = vmatprep.subr.bf16.mxu0 0
  %2563 = vmatpush1.bf16.msra.mxu0 %v1932
  %2564 = vmatprep.subr.bf16.mxu0 0
  %2565 = vmatpush2.bf16.msra.mxu0 %v2037
  %2566 = vmatprep.subr.bf16.mxu0 0
  %2567 = vmatpush2.bf16.msra.mxu0 %v2030
  %2568 = vmatprep.subr.bf16.mxu0 0
  %2569 = vmatpush2.bf16.msra.mxu0 %v2023
  %2570 = vmatprep.subr.bf16.mxu0 0
  %2571 = vmatpush2.bf16.msra.mxu0 %v2016
  %2572 = vmatprep.subr.bf16.mxu0 0
  %2573 = vmatpush2.bf16.msra.mxu0 %v2009
  %2574 = vmatprep.subr.bf16.mxu0 0
  %2575 = vmatpush2.bf16.msra.mxu0 %v2002
  %2576 = vmatprep.subr.bf16.mxu0 0
  %2577 = vmatpush2.bf16.msra.mxu0 %v1995
  %2578 = vmatprep.subr.bf16.mxu0 0
  %2579 = vmatpush2.bf16.msra.mxu0 %v1988
  %2580 = vmatprep.mubr.bf16.mxu0 %v816
  %2581 = vmatmul.mubr.bf16.gmra.mxu0 %v815
  %v2582 = vpop.f32.mrf.mxu0
  %v2583 = vadd.f32 %v2543, %v2582
  %v2584 = vpop.f32.mrf.mxu0
  %v2585 = vpop.f32.mrf.mxu0
  %v2586 = vpop.f32.mrf.mxu0
  %2587 = vdwg.mxu0
  %v2588 = vmax.f32 %v2338, 0.0
  %v2589 = vmax.f32 %v2340, 0.0
  %v2590 = vmax.f32 %v2420, 0.0
  %v2591 = vmax.f32 %v2422, 0.0
  %v2592 = vmax.f32 %v2502, 0.0
  %v2593 = vmax.f32 %v2504, 0.0
  %v2594 = vmax.f32 %v2583, 0.0
  %2595 = vst [vmem:[%s11] sm:$0xff] %v2588
  %2596 = vst [vmem:[%s11 + $0x8] sm:$0xff] %v2589
  %2597 = vst [vmem:[%s11 + $0x10] sm:$0xff] %v2590
  %2598 = vst [vmem:[%s11 + $0x18] sm:$0xff] %v2591
  %2599 = vst [vmem:[%s11 + $0x20] sm:$0xff] %v2592
  %2600 = vst [vmem:[%s11 + $0x28] sm:$0xff] %v2593
  %vm2601 = vcmask 130048
  %2602 = vst.msk [vmem:[%s11 + $0x30] sm:$0xff] %vm2601, %v2594
  // Predicated region
  $region46: #{decoder_forward.1} parent=0 // pred_check
    _
  $region47: #{decoder_forward.1} parent=0 // pred_check_branch
    %2604 = sbr.rel (0) target = $region49
  $region48: #{decoder_forward.1} parent=0 // pred_region
    _
  $region49: #{decoder_forward.1} parent=0 // pred_fallthru
    _
  // Predicated region
  $region50: #{decoder_forward.1} parent=0 // pred_check
    _
  $region51: #{decoder_forward.1} parent=0 // pred_check_branch
    %2606 = sbr.rel (0) target = $region53
  $region52: #{decoder_forward.1} parent=0 // pred_region
    _
  $region53: #{decoder_forward.1} parent=0 // pred_fallthru
    _

</llo_original>
